<compile_context>
chip_gen: v5e
topology: v5e:2x2
jax: 0.10.0
libtpu: 0.0.40
codegen_flags: <defaults>
</compile_context>

<pallas_src>
import math

import numpy as np
import jax
import jax.numpy as jnp
from jax.experimental import pallas as pl
from jax.experimental.pallas import tpu as pltpu


# ----------------------------------------------------------------------------- index generation

def _shift(kernels):
    mink, maxk = min(kernels), max(kernels)
    nk = math.ceil(maxk / mink)
    padding = mink - 1
    mid = maxk // 2
    real_pad = [mid - i * mink - padding for i in range(nk)]
    return padding, real_pad


class AddShiftMpBlurModule:
    """JAX/Pallas port of AddShift_mp_blur_module (forward only).

    Index buffers (pad_hv, idx_identit, idx_out) are generated deterministically at init
    time (seeded numpy RNG), mirroring shuffle_idx_2_gen_pads of the PyTorch module, and are
    baked into the Pallas kernel as compile-time constants.
    """

    def __init__(self, big_kernel, small_kernel, c_out, c_in, group_in, seed=0):
        self.c_in = c_in
        self.c_out = c_out
        self.group_in = group_in
        self.nk = math.ceil(big_kernel / small_kernel)
        self.kernels = (small_kernel, big_kernel)
        self.small_kernel = small_kernel
        assert c_in == c_out * self.nk, "c_in (out_n) must equal c_out * nk"
        self.extra_pad, self.pad_hv, self.idx_identit = self._gen_pads(
            small_kernel, c_out, group_in, seed)
        # idx_out[r] == r // nk by construction; the kernel uses r // nk statically.
        self.idx_out = np.repeat(np.arange(c_out, dtype=np.int32), self.nk)
        self._fwd_cache = {}

    def _gen_pads(self, small_kernel, c_out, group_in, seed):
        rng = np.random.default_rng(seed)
        padding, real_pad = _shift(self.kernels)
        extra_pad = padding - small_kernel // 2
        nk = self.nk
        idx_offset = np.array(real_pad * c_out, dtype=np.int32)       # (c_out*nk,)
        pad_horizon, pad_vertica, identity_idxs = [], [], []
        for _ in range(group_in):
            idx_h = np.concatenate([rng.permutation(nk) + i * nk for i in range(c_out)])
            idx_v = np.concatenate([rng.permutation(nk) + i * nk for i in range(c_out)])
            pad_horizon.append(idx_offset[np.argsort(idx_h)])
            pad_vertica.append(idx_offset[np.argsort(idx_v)])
            tmp = []
            for _ in range(c_out):
                identity_idx = np.full((nk,), -1, dtype=np.int32)
                if nk > 9:
                    pos = rng.choice(nk, 9, replace=False)
                    identity_idx[pos] = np.arange(9, dtype=np.int32)
                else:
                    pos = rng.choice(nk, 4, replace=False)
                    identity_idx[pos] = np.array([0, 2, 6, 8], dtype=np.int32)
                tmp.append(identity_idx)
            identity_idxs.append(np.concatenate(tmp))
        # (c_out*nk, 2*group_in): cols [0:g) horizontal shifts, [g:2g) vertical shifts
        pad_hv = np.stack(pad_horizon + pad_vertica, axis=0).T.astype(np.int32).copy()
        # (c_out*nk, group_in)
        idx_identit = np.stack(identity_idxs, axis=0).T.astype(np.int32).copy()
        return extra_pad, pad_hv, idx_identit

    def __call__(self, x, b, hout, wout):
        del b  # batch taken from x.shape
        key = (tuple(x.shape), str(x.dtype), hout, wout)
        if key not in self._fwd_cache:
            self._fwd_cache[key] = _build_forward(
                x.shape, x.dtype, self.pad_hv, self.idx_identit,
                c_out=self.c_out, nk=self.nk, group_in=self.group_in,
                extra_pad=self.extra_pad, h_out=hout, w_out=wout)
        return self._fwd_cache[key](x)


# ----------------------------------------------------------------------------- Pallas kernel

def _build_forward(x_shape, x_dtype, pad_hv, idx_identit, *, c_out, nk, group_in,
                   extra_pad, h_out, w_out):
    B, C_in, H_in, W_in = x_shape
    assert C_in == c_out * nk
    assert H_in == h_out + 2 * extra_pad and W_in == w_out + 2 * extra_pad
    assert extra_pad >= 0

    pad_hv = np.asarray(pad_hv)
    idx_identit = np.asarray(idx_identit)

    # Enumerate every (dy, dx) tap offset so the wrapper-side guard pad makes all shifted read
    # windows fully in-bounds (OOB taps read the zero guard, matching implicit zero padding).
    offsets = []
    for r in range(C_in):
        for g in range(group_in):
            offsets.append((0, int(pad_hv[r, g])))                    # horizontal branch
            offsets.append((int(pad_hv[r, group_in + g]), 0))         # vertical branch
            t = int(idx_identit[r, g])
            if t >= 0:
                offsets.append((t // 3 - 1, t % 3 - 1))               # blur branch
    dys = [o[0] for o in offsets]
    dxs = [o[1] for o in offsets]
    pad_top = max(0, -(extra_pad + min(dys)))
    pad_bot = max(0, extra_pad + max(dys) + h_out - H_in)
    pad_left = max(0, -(extra_pad + min(dxs)))
    pad_right = max(0, extra_pad + max(dxs) + w_out - W_in)
    HG = H_in + pad_top + pad_bot
    WG = W_in + pad_left + pad_right
    n_taps = len(offsets)

    def kernel(x_ref, oh_ref, ov_ref, oi_ref):
        # x_ref block: (1, C_in, HG, WG) guard-padded plane set for batch b (native dtype).
        zero = jnp.zeros((h_out, w_out), jnp.float32)
        for co in range(c_out):                               # co outermost
            # 3 * group_in small register accumulators for this output channel.
            acc = [[zero, zero, zero] for _ in range(group_in)]
            for j in range(nk):
                r = co * nk + j
                # Load + cast each input plane exactly once; reuse across all groups/branches.
                plane = x_ref[0, r].astype(jnp.float32)       # (HG, WG)

                def win(dy, dx, _plane=plane):
                    r0 = pad_top + extra_pad + dy
                    c0 = pad_left + extra_pad + dx
                    return _plane[r0:r0 + h_out, c0:c0 + w_out]   # always fully in-bounds

                for g in range(group_in):
                    acc[g][0] = acc[g][0] + win(0, int(pad_hv[r, g]))              # horizontal
                    acc[g][1] = acc[g][1] + win(int(pad_hv[r, group_in + g]), 0)   # vertical
                    t = int(idx_identit[r, g])
                    if t >= 0:                                                     # blur (t<0 skipped)
                        acc[g][2] = acc[g][2] + win(t // 3 - 1, t % 3 - 1)

            # Group fusion ("mp"): element-wise max over groups, folded in registers,
            # then a single store per (channel, branch) in the input dtype.
            vh, vv, vi = acc[0]
            for g in range(1, group_in):
                vh = jnp.maximum(vh, acc[g][0])
                vv = jnp.maximum(vv, acc[g][1])
                vi = jnp.maximum(vi, acc[g][2])
            oh_ref[0, co] = vh.astype(oh_ref.dtype)
            ov_ref[0, co] = vv.astype(ov_ref.dtype)
            oi_ref[0, co] = vi.astype(oi_ref.dtype)

    out_dtype = x_dtype
    out_sds = jax.ShapeDtypeStruct((B, c_out, h_out, w_out), out_dtype)
    out_spec = pl.BlockSpec((1, c_out, h_out, w_out), lambda b: (b, 0, 0, 0))

    grid_spec = pltpu.PrefetchScalarGridSpec(
        num_scalar_prefetch=0,                          # all index buffers are baked-in constants
        grid=(B,),
        in_specs=[pl.BlockSpec((1, C_in, HG, WG), lambda b: (b, 0, 0, 0))],
        out_specs=(out_spec, out_spec, out_spec),
    )

    in_isz = np.dtype(x_dtype).itemsize
    out_isz = np.dtype(out_dtype).itemsize
    cost = pl.CostEstimate(
        flops=B * (n_taps + 3 * (group_in - 1) * c_out) * h_out * w_out,
        transcendentals=0,
        bytes_accessed=B * (C_in * HG * WG * in_isz
                            + 3 * c_out * h_out * w_out * out_isz),
    )

    fwd_call = pl.pallas_call(
        kernel,
        out_shape=(out_sds, out_sds, out_sds),
        grid_spec=grid_spec,
        compiler_params=pltpu.CompilerParams(
            dimension_semantics=("parallel",),          # shard batch across TCs on v7x
            vmem_limit_bytes=32 * 1024 * 1024),
        cost_estimate=cost,
    )

    def forward(x):
        # Guard pad once in the wrapper so every in-kernel tap is a full-size static slice.
        xg = jnp.pad(x, ((0, 0), (0, 0), (pad_top, pad_bot), (pad_left, pad_right)))
        return fwd_call(xg)

    return jax.jit(forward)


# ----------------------------------------------------------------------------- reference + main

def _reference(x, pad_hv, idx_identit, extra_pad, c_out, nk, group_in, h_out, w_out):
    x = np.asarray(x, np.float32)
    B, C_in, H_in, W_in = x.shape
    guard = int(np.max(np.abs(pad_hv))) + 1
    xp = np.pad(x, ((0, 0), (0, 0), (guard, guard), (guard, guard)))
    base = guard + extra_pad
    out = np.zeros((3, group_in, B, c_out, h_out, w_out), np.float32)
    for g in range(group_in):
        for r in range(C_in):
            co = r // nk
            ph = int(pad_hv[r, g])
            pv = int(pad_hv[r, group_in + g])
            out[0, g, :, co] += xp[:, r, base:base + h_out, base + ph:base + ph + w_out]
            out[1, g, :, co] += xp[:, r, base + pv:base + pv + h_out, base:base + w_out]
            t = int(idx_identit[r, g])
            if t >= 0:
                dy, dx = t // 3 - 1, t % 3 - 1
                out[2, g, :, co] += xp[:, r, base + dy:base + dy + h_out,
                                       base + dx:base + dx + w_out]
    return out.max(axis=1)  # (3, B, c_out, h_out, w_out)


if __name__ == "__main__":
    big_kernel, small_kernel = 13, 3
    c_out, group_in = 4, 2
    nk = math.ceil(big_kernel / small_kernel)            # 5
    c_in = c_out * nk                                    # 20
    mod = AddShiftMpBlurModule(big_kernel, small_kernel, c_out, c_in, group_in, seed=0)

    B, hout, wout = 2, 16, 16
    hin = hout + 2 * mod.extra_pad
    win = wout + 2 * mod.extra_pad

    key = jax.random.PRNGKey(0)
    x = jax.random.normal(key, (B, c_in, hin, win), dtype=jnp.float32)

    xh, xv, xi = mod(x, B, hout, wout)
    (xh, xv, xi) = jax.block_until_ready((xh, xv, xi))

    ref = _reference(np.asarray(x), mod.pad_hv, mod.idx_identit, mod.extra_pad,
                     c_out, nk, group_in, hout, wout)
    np.testing.assert_allclose(np.asarray(xh), ref[0], rtol=1e-5, atol=1e-5)
    np.testing.assert_allclose(np.asarray(xv), ref[1], rtol=1e-5, atol=1e-5)
    np.testing.assert_allclose(np.asarray(xi), ref[2], rtol=1e-5, atol=1e-5)
    print("KERNEL_OK")
</pallas_src>

<mosaic_0001>
module attributes {stable_mosaic.version = 11 : i64} {
  func.func @kernel(%arg0: i32, %arg1: memref<1x20x28x28xf32, #tpu.memory_space<vmem>>, %arg2: memref<1x4x16x16xf32, #tpu.memory_space<vmem>>, %arg3: memref<1x4x16x16xf32, #tpu.memory_space<vmem>>, %arg4: memref<1x4x16x16xf32, #tpu.memory_space<vmem>>) attributes {dimension_semantics = [#tpu.dimension_semantics<parallel>], iteration_bounds = array<i64: 2>, scalar_prefetch = 0 : i64, scratch_operands = 0 : i64, tpu.core_type = #tpu.core_type<tc>, window_params = [{transform_indices = @transform_0, window_bounds = array<i64: 1, 20, 28, 28>}, {transform_indices = @transform_1, window_bounds = array<i64: 1, 4, 16, 16>}, {transform_indices = @transform_2, window_bounds = array<i64: 1, 4, 16, 16>}, {transform_indices = @transform_3, window_bounds = array<i64: 1, 4, 16, 16>}]} {
    %cst = arith.constant 0.000000e+00 : f32
    %0 = vector.broadcast %cst : f32 to vector<16x16xf32>
    %c0 = arith.constant 0 : index
    %c0_0 = arith.constant 0 : index
    %c0_1 = arith.constant 0 : index
    %c0_2 = arith.constant 0 : index
    %1 = vector.load %arg1[%c0, %c0_0, %c0_1, %c0_2] : memref<1x20x28x28xf32, #tpu.memory_space<vmem>>, vector<1x1x28x28xf32>
    %2 = vector.shape_cast %1 : vector<1x1x28x28xf32> to vector<28x28xf32>
    %3 = vector.extract_strided_slice %2 {offsets = [8, 3], sizes = [16, 16], strides = [1, 1]} : vector<28x28xf32> to vector<16x16xf32>
    %4 = arith.addf %0, %3 : vector<16x16xf32>
    %5 = vector.extract_strided_slice %2 {offsets = [0, 8], sizes = [16, 16], strides = [1, 1]} : vector<28x28xf32> to vector<16x16xf32>
    %6 = arith.addf %0, %5 : vector<16x16xf32>
    %7 = vector.extract_strided_slice %2 {offsets = [7, 7], sizes = [16, 16], strides = [1, 1]} : vector<28x28xf32> to vector<16x16xf32>
    %8 = arith.addf %0, %7 : vector<16x16xf32>
    %9 = vector.extract_strided_slice %2 {offsets = [8, 0], sizes = [16, 16], strides = [1, 1]} : vector<28x28xf32> to vector<16x16xf32>
    %10 = arith.addf %0, %9 : vector<16x16xf32>
    %11 = vector.extract_strided_slice %2 {offsets = [6, 8], sizes = [16, 16], strides = [1, 1]} : vector<28x28xf32> to vector<16x16xf32>
    %12 = arith.addf %0, %11 : vector<16x16xf32>
    %13 = vector.extract_strided_slice %2 {offsets = [7, 9], sizes = [16, 16], strides = [1, 1]} : vector<28x28xf32> to vector<16x16xf32>
    %14 = arith.addf %0, %13 : vector<16x16xf32>
    %c0_3 = arith.constant 0 : index
    %c1 = arith.constant 1 : index
    %c0_4 = arith.constant 0 : index
    %c0_5 = arith.constant 0 : index
    %15 = vector.load %arg1[%c0_3, %c1, %c0_4, %c0_5] : memref<1x20x28x28xf32, #tpu.memory_space<vmem>>, vector<1x1x28x28xf32>
    %16 = vector.shape_cast %15 : vector<1x1x28x28xf32> to vector<28x28xf32>
    %17 = vector.extract_strided_slice %16 {offsets = [8, 0], sizes = [16, 16], strides = [1, 1]} : vector<28x28xf32> to vector<16x16xf32>
    %18 = arith.addf %4, %17 : vector<16x16xf32>
    %19 = vector.extract_strided_slice %16 {offsets = [6, 8], sizes = [16, 16], strides = [1, 1]} : vector<28x28xf32> to vector<16x16xf32>
    %20 = arith.addf %6, %19 : vector<16x16xf32>
    %21 = vector.extract_strided_slice %16 {offsets = [8, 3], sizes = [16, 16], strides = [1, 1]} : vector<28x28xf32> to vector<16x16xf32>
    %22 = arith.addf %10, %21 : vector<16x16xf32>
    %23 = vector.extract_strided_slice %16 {offsets = [9, 8], sizes = [16, 16], strides = [1, 1]} : vector<28x28xf32> to vector<16x16xf32>
    %24 = arith.addf %12, %23 : vector<16x16xf32>
    %25 = vector.extract_strided_slice %16 {offsets = [9, 7], sizes = [16, 16], strides = [1, 1]} : vector<28x28xf32> to vector<16x16xf32>
    %26 = arith.addf %14, %25 : vector<16x16xf32>
    %c0_6 = arith.constant 0 : index
    %c2 = arith.constant 2 : index
    %c0_7 = arith.constant 0 : index
    %c0_8 = arith.constant 0 : index
    %27 = vector.load %arg1[%c0_6, %c2, %c0_7, %c0_8] : memref<1x20x28x28xf32, #tpu.memory_space<vmem>>, vector<1x1x28x28xf32>
    %28 = vector.shape_cast %27 : vector<1x1x28x28xf32> to vector<28x28xf32>
    %29 = vector.extract_strided_slice %28 {offsets = [8, 12], sizes = [16, 16], strides = [1, 1]} : vector<28x28xf32> to vector<16x16xf32>
    %30 = arith.addf %18, %29 : vector<16x16xf32>
    %31 = vector.extract_strided_slice %28 {offsets = [9, 8], sizes = [16, 16], strides = [1, 1]} : vector<28x28xf32> to vector<16x16xf32>
    %32 = arith.addf %20, %31 : vector<16x16xf32>
    %33 = vector.extract_strided_slice %28 {offsets = [9, 9], sizes = [16, 16], strides = [1, 1]} : vector<28x28xf32> to vector<16x16xf32>
    %34 = arith.addf %8, %33 : vector<16x16xf32>
    %35 = vector.extract_strided_slice %28 {offsets = [8, 6], sizes = [16, 16], strides = [1, 1]} : vector<28x28xf32> to vector<16x16xf32>
    %36 = arith.addf %22, %35 : vector<16x16xf32>
    %37 = vector.extract_strided_slice %28 {offsets = [0, 8], sizes = [16, 16], strides = [1, 1]} : vector<28x28xf32> to vector<16x16xf32>
    %38 = arith.addf %24, %37 : vector<16x16xf32>
    %39 = vector.extract_strided_slice %28 {offsets = [7, 7], sizes = [16, 16], strides = [1, 1]} : vector<28x28xf32> to vector<16x16xf32>
    %40 = arith.addf %26, %39 : vector<16x16xf32>
    %c0_9 = arith.constant 0 : index
    %c3 = arith.constant 3 : index
    %c0_10 = arith.constant 0 : index
    %c0_11 = arith.constant 0 : index
    %41 = vector.load %arg1[%c0_9, %c3, %c0_10, %c0_11] : memref<1x20x28x28xf32, #tpu.memory_space<vmem>>, vector<1x1x28x28xf32>
    %42 = vector.shape_cast %41 : vector<1x1x28x28xf32> to vector<28x28xf32>
    %43 = vector.extract_strided_slice %42 {offsets = [8, 6], sizes = [16, 16], strides = [1, 1]} : vector<28x28xf32> to vector<16x16xf32>
    %44 = arith.addf %30, %43 : vector<16x16xf32>
    %45 = vector.extract_strided_slice %42 {offsets = [3, 8], sizes = [16, 16], strides = [1, 1]} : vector<28x28xf32> to vector<16x16xf32>
    %46 = arith.addf %32, %45 : vector<16x16xf32>
    %47 = vector.extract_strided_slice %42 {offsets = [7, 9], sizes = [16, 16], strides = [1, 1]} : vector<28x28xf32> to vector<16x16xf32>
    %48 = arith.addf %34, %47 : vector<16x16xf32>
    %49 = vector.extract_strided_slice %42 {offsets = [8, 12], sizes = [16, 16], strides = [1, 1]} : vector<28x28xf32> to vector<16x16xf32>
    %50 = arith.addf %36, %49 : vector<16x16xf32>
    %51 = vector.extract_strided_slice %42 {offsets = [12, 8], sizes = [16, 16], strides = [1, 1]} : vector<28x28xf32> to vector<16x16xf32>
    %52 = arith.addf %38, %51 : vector<16x16xf32>
    %c0_12 = arith.constant 0 : index
    %c4 = arith.constant 4 : index
    %c0_13 = arith.constant 0 : index
    %c0_14 = arith.constant 0 : index
    %53 = vector.load %arg1[%c0_12, %c4, %c0_13, %c0_14] : memref<1x20x28x28xf32, #tpu.memory_space<vmem>>, vector<1x1x28x28xf32>
    %54 = vector.shape_cast %53 : vector<1x1x28x28xf32> to vector<28x28xf32>
    %55 = vector.extract_strided_slice %54 {offsets = [8, 9], sizes = [16, 16], strides = [1, 1]} : vector<28x28xf32> to vector<16x16xf32>
    %56 = arith.addf %44, %55 : vector<16x16xf32>
    %57 = vector.extract_strided_slice %54 {offsets = [12, 8], sizes = [16, 16], strides = [1, 1]} : vector<28x28xf32> to vector<16x16xf32>
    %58 = arith.addf %46, %57 : vector<16x16xf32>
    %59 = vector.extract_strided_slice %54 {offsets = [9, 7], sizes = [16, 16], strides = [1, 1]} : vector<28x28xf32> to vector<16x16xf32>
    %60 = arith.addf %48, %59 : vector<16x16xf32>
    %61 = vector.extract_strided_slice %54 {offsets = [8, 9], sizes = [16, 16], strides = [1, 1]} : vector<28x28xf32> to vector<16x16xf32>
    %62 = arith.addf %50, %61 : vector<16x16xf32>
    %63 = vector.extract_strided_slice %54 {offsets = [3, 8], sizes = [16, 16], strides = [1, 1]} : vector<28x28xf32> to vector<16x16xf32>
    %64 = arith.addf %52, %63 : vector<16x16xf32>
    %65 = vector.extract_strided_slice %54 {offsets = [9, 9], sizes = [16, 16], strides = [1, 1]} : vector<28x28xf32> to vector<16x16xf32>
    %66 = arith.addf %40, %65 : vector<16x16xf32>
    %67 = arith.maximumf %56, %62 : vector<16x16xf32>
    %68 = arith.maximumf %58, %64 : vector<16x16xf32>
    %69 = arith.maximumf %60, %66 : vector<16x16xf32>
    %c0_15 = arith.constant 0 : index
    %c0_16 = arith.constant 0 : index
    %c0_17 = arith.constant 0 : index
    %c0_18 = arith.constant 0 : index
    %70 = vector.load %arg2[%c0_15, %c0_16, %c0_17, %c0_18] : memref<1x4x16x16xf32, #tpu.memory_space<vmem>>, vector<1x1x16x16xf32>
    %71 = vector.shape_cast %70 : vector<1x1x16x16xf32> to vector<16x16xf32>
    %72 = vector.shape_cast %67 : vector<16x16xf32> to vector<1x1x16x16xf32>
    tpu.vector_store %arg2[%c0_15, %c0_16, %c0_17, %c0_18], %72 {strides = array<i32>} : memref<1x4x16x16xf32, #tpu.memory_space<vmem>>, vector<1x1x16x16xf32>,
    %c0_19 = arith.constant 0 : index
    %c0_20 = arith.constant 0 : index
    %c0_21 = arith.constant 0 : index
    %c0_22 = arith.constant 0 : index
    %73 = vector.load %arg3[%c0_19, %c0_20, %c0_21, %c0_22] : memref<1x4x16x16xf32, #tpu.memory_space<vmem>>, vector<1x1x16x16xf32>
    %74 = vector.shape_cast %73 : vector<1x1x16x16xf32> to vector<16x16xf32>
    %75 = vector.shape_cast %68 : vector<16x16xf32> to vector<1x1x16x16xf32>
    tpu.vector_store %arg3[%c0_19, %c0_20, %c0_21, %c0_22], %75 {strides = array<i32>} : memref<1x4x16x16xf32, #tpu.memory_space<vmem>>, vector<1x1x16x16xf32>,
    %c0_23 = arith.constant 0 : index
    %c0_24 = arith.constant 0 : index
    %c0_25 = arith.constant 0 : index
    %c0_26 = arith.constant 0 : index
    %76 = vector.load %arg4[%c0_23, %c0_24, %c0_25, %c0_26] : memref<1x4x16x16xf32, #tpu.memory_space<vmem>>, vector<1x1x16x16xf32>
    %77 = vector.shape_cast %76 : vector<1x1x16x16xf32> to vector<16x16xf32>
    %78 = vector.shape_cast %69 : vector<16x16xf32> to vector<1x1x16x16xf32>
    tpu.vector_store %arg4[%c0_23, %c0_24, %c0_25, %c0_26], %78 {strides = array<i32>} : memref<1x4x16x16xf32, #tpu.memory_space<vmem>>, vector<1x1x16x16xf32>,
    %c0_27 = arith.constant 0 : index
    %c5 = arith.constant 5 : index
    %c0_28 = arith.constant 0 : index
    %c0_29 = arith.constant 0 : index
    %79 = vector.load %arg1[%c0_27, %c5, %c0_28, %c0_29] : memref<1x20x28x28xf32, #tpu.memory_space<vmem>>, vector<1x1x28x28xf32>
    %80 = vector.shape_cast %79 : vector<1x1x28x28xf32> to vector<28x28xf32>
    %81 = vector.extract_strided_slice %80 {offsets = [8, 3], sizes = [16, 16], strides = [1, 1]} : vector<28x28xf32> to vector<16x16xf32>
    %82 = arith.addf %0, %81 : vector<16x16xf32>
    %83 = vector.extract_strided_slice %80 {offsets = [9, 8], sizes = [16, 16], strides = [1, 1]} : vector<28x28xf32> to vector<16x16xf32>
    %84 = arith.addf %0, %83 : vector<16x16xf32>
    %85 = vector.extract_strided_slice %80 {offsets = [7, 7], sizes = [16, 16], strides = [1, 1]} : vector<28x28xf32> to vector<16x16xf32>
    %86 = arith.addf %0, %85 : vector<16x16xf32>
    %87 = vector.extract_strided_slice %80 {offsets = [8, 3], sizes = [16, 16], strides = [1, 1]} : vector<28x28xf32> to vector<16x16xf32>
    %88 = arith.addf %0, %87 : vector<16x16xf32>
    %89 = vector.extract_strided_slice %80 {offsets = [3, 8], sizes = [16, 16], strides = [1, 1]} : vector<28x28xf32> to vector<16x16xf32>
    %90 = arith.addf %0, %89 : vector<16x16xf32>
    %91 = vector.extract_strided_slice %80 {offsets = [7, 9], sizes = [16, 16], strides = [1, 1]} : vector<28x28xf32> to vector<16x16xf32>
    %92 = arith.addf %0, %91 : vector<16x16xf32>
    %c0_30 = arith.constant 0 : index
    %c6 = arith.constant 6 : index
    %c0_31 = arith.constant 0 : index
    %c0_32 = arith.constant 0 : index
    %93 = vector.load %arg1[%c0_30, %c6, %c0_31, %c0_32] : memref<1x20x28x28xf32, #tpu.memory_space<vmem>>, vector<1x1x28x28xf32>
    %94 = vector.shape_cast %93 : vector<1x1x28x28xf32> to vector<28x28xf32>
    %95 = vector.extract_strided_slice %94 {offsets = [8, 9], sizes = [16, 16], strides = [1, 1]} : vector<28x28xf32> to vector<16x16xf32>
    %96 = arith.addf %82, %95 : vector<16x16xf32>
    %97 = vector.extract_strided_slice %94 {offsets = [0, 8], sizes = [16, 16], strides = [1, 1]} : vector<28x28xf32> to vector<16x16xf32>
    %98 = arith.addf %84, %97 : vector<16x16xf32>
    %99 = vector.extract_strided_slice %94 {offsets = [9, 7], sizes = [16, 16], strides = [1, 1]} : vector<28x28xf32> to vector<16x16xf32>
    %100 = arith.addf %86, %99 : vector<16x16xf32>
    %101 = vector.extract_strided_slice %94 {offsets = [8, 9], sizes = [16, 16], strides = [1, 1]} : vector<28x28xf32> to vector<16x16xf32>
    %102 = arith.addf %88, %101 : vector<16x16xf32>
    %103 = vector.extract_strided_slice %94 {offsets = [0, 8], sizes = [16, 16], strides = [1, 1]} : vector<28x28xf32> to vector<16x16xf32>
    %104 = arith.addf %90, %103 : vector<16x16xf32>
    %105 = vector.extract_strided_slice %94 {offsets = [9, 7], sizes = [16, 16], strides = [1, 1]} : vector<28x28xf32> to vector<16x16xf32>
    %106 = arith.addf %92, %105 : vector<16x16xf32>
    %c0_33 = arith.constant 0 : index
    %c7 = arith.constant 7 : index
    %c0_34 = arith.constant 0 : index
    %c0_35 = arith.constant 0 : index
    %107 = vector.load %arg1[%c0_33, %c7, %c0_34, %c0_35] : memref<1x20x28x28xf32, #tpu.memory_space<vmem>>, vector<1x1x28x28xf32>
    %108 = vector.shape_cast %107 : vector<1x1x28x28xf32> to vector<28x28xf32>
    %109 = vector.extract_strided_slice %108 {offsets = [8, 6], sizes = [16, 16], strides = [1, 1]} : vector<28x28xf32> to vector<16x16xf32>
    %110 = arith.addf %96, %109 : vector<16x16xf32>
    %111 = vector.extract_strided_slice %108 {offsets = [3, 8], sizes = [16, 16], strides = [1, 1]} : vector<28x28xf32> to vector<16x16xf32>
    %112 = arith.addf %98, %111 : vector<16x16xf32>
    %113 = vector.extract_strided_slice %108 {offsets = [8, 0], sizes = [16, 16], strides = [1, 1]} : vector<28x28xf32> to vector<16x16xf32>
    %114 = arith.addf %102, %113 : vector<16x16xf32>
    %115 = vector.extract_strided_slice %108 {offsets = [12, 8], sizes = [16, 16], strides = [1, 1]} : vector<28x28xf32> to vector<16x16xf32>
    %116 = arith.addf %104, %115 : vector<16x16xf32>
    %117 = vector.extract_strided_slice %108 {offsets = [7, 7], sizes = [16, 16], strides = [1, 1]} : vector<28x28xf32> to vector<16x16xf32>
    %118 = arith.addf %106, %117 : vector<16x16xf32>
    %c0_36 = arith.constant 0 : index
    %c8 = arith.constant 8 : index
    %c0_37 = arith.constant 0 : index
    %c0_38 = arith.constant 0 : index
    %119 = vector.load %arg1[%c0_36, %c8, %c0_37, %c0_38] : memref<1x20x28x28xf32, #tpu.memory_space<vmem>>, vector<1x1x28x28xf32>
    %120 = vector.shape_cast %119 : vector<1x1x28x28xf32> to vector<28x28xf32>
    %121 = vector.extract_strided_slice %120 {offsets = [8, 0], sizes = [16, 16], strides = [1, 1]} : vector<28x28xf32> to vector<16x16xf32>
    %122 = arith.addf %110, %121 : vector<16x16xf32>
    %123 = vector.extract_strided_slice %120 {offsets = [6, 8], sizes = [16, 16], strides = [1, 1]} : vector<28x28xf32> to vector<16x16xf32>
    %124 = arith.addf %112, %123 : vector<16x16xf32>
    %125 = vector.extract_strided_slice %120 {offsets = [7, 9], sizes = [16, 16], strides = [1, 1]} : vector<28x28xf32> to vector<16x16xf32>
    %126 = arith.addf %100, %125 : vector<16x16xf32>
    %127 = vector.extract_strided_slice %120 {offsets = [8, 6], sizes = [16, 16], strides = [1, 1]} : vector<28x28xf32> to vector<16x16xf32>
    %128 = arith.addf %114, %127 : vector<16x16xf32>
    %129 = vector.extract_strided_slice %120 {offsets = [9, 8], sizes = [16, 16], strides = [1, 1]} : vector<28x28xf32> to vector<16x16xf32>
    %130 = arith.addf %116, %129 : vector<16x16xf32>
    %c0_39 = arith.constant 0 : index
    %c9 = arith.constant 9 : index
    %c0_40 = arith.constant 0 : index
    %c0_41 = arith.constant 0 : index
    %131 = vector.load %arg1[%c0_39, %c9, %c0_40, %c0_41] : memref<1x20x28x28xf32, #tpu.memory_space<vmem>>, vector<1x1x28x28xf32>
    %132 = vector.shape_cast %131 : vector<1x1x28x28xf32> to vector<28x28xf32>
    %133 = vector.extract_strided_slice %132 {offsets = [8, 12], sizes = [16, 16], strides = [1, 1]} : vector<28x28xf32> to vector<16x16xf32>
    %134 = arith.addf %122, %133 : vector<16x16xf32>
    %135 = vector.extract_strided_slice %132 {offsets = [12, 8], sizes = [16, 16], strides = [1, 1]} : vector<28x28xf32> to vector<16x16xf32>
    %136 = arith.addf %124, %135 : vector<16x16xf32>
    %137 = vector.extract_strided_slice %132 {offsets = [9, 9], sizes = [16, 16], strides = [1, 1]} : vector<28x28xf32> to vector<16x16xf32>
    %138 = arith.addf %126, %137 : vector<16x16xf32>
    %139 = vector.extract_strided_slice %132 {offsets = [8, 12], sizes = [16, 16], strides = [1, 1]} : vector<28x28xf32> to vector<16x16xf32>
    %140 = arith.addf %128, %139 : vector<16x16xf32>
    %141 = vector.extract_strided_slice %132 {offsets = [6, 8], sizes = [16, 16], strides = [1, 1]} : vector<28x28xf32> to vector<16x16xf32>
    %142 = arith.addf %130, %141 : vector<16x16xf32>
    %143 = vector.extract_strided_slice %132 {offsets = [9, 9], sizes = [16, 16], strides = [1, 1]} : vector<28x28xf32> to vector<16x16xf32>
    %144 = arith.addf %118, %143 : vector<16x16xf32>
    %145 = arith.maximumf %134, %140 : vector<16x16xf32>
    %146 = arith.maximumf %136, %142 : vector<16x16xf32>
    %147 = arith.maximumf %138, %144 : vector<16x16xf32>
    %c0_42 = arith.constant 0 : index
    %c1_43 = arith.constant 1 : index
    %c0_44 = arith.constant 0 : index
    %c0_45 = arith.constant 0 : index
    %148 = vector.load %arg2[%c0_42, %c1_43, %c0_44, %c0_45] : memref<1x4x16x16xf32, #tpu.memory_space<vmem>>, vector<1x1x16x16xf32>
    %149 = vector.shape_cast %148 : vector<1x1x16x16xf32> to vector<16x16xf32>
    %150 = vector.shape_cast %145 : vector<16x16xf32> to vector<1x1x16x16xf32>
    tpu.vector_store %arg2[%c0_42, %c1_43, %c0_44, %c0_45], %150 {strides = array<i32>} : memref<1x4x16x16xf32, #tpu.memory_space<vmem>>, vector<1x1x16x16xf32>,
    %c0_46 = arith.constant 0 : index
    %c1_47 = arith.constant 1 : index
    %c0_48 = arith.constant 0 : index
    %c0_49 = arith.constant 0 : index
    %151 = vector.load %arg3[%c0_46, %c1_47, %c0_48, %c0_49] : memref<1x4x16x16xf32, #tpu.memory_space<vmem>>, vector<1x1x16x16xf32>
    %152 = vector.shape_cast %151 : vector<1x1x16x16xf32> to vector<16x16xf32>
    %153 = vector.shape_cast %146 : vector<16x16xf32> to vector<1x1x16x16xf32>
    tpu.vector_store %arg3[%c0_46, %c1_47, %c0_48, %c0_49], %153 {strides = array<i32>} : memref<1x4x16x16xf32, #tpu.memory_space<vmem>>, vector<1x1x16x16xf32>,
    %c0_50 = arith.constant 0 : index
    %c1_51 = arith.constant 1 : index
    %c0_52 = arith.constant 0 : index
    %c0_53 = arith.constant 0 : index
    %154 = vector.load %arg4[%c0_50, %c1_51, %c0_52, %c0_53] : memref<1x4x16x16xf32, #tpu.memory_space<vmem>>, vector<1x1x16x16xf32>
    %155 = vector.shape_cast %154 : vector<1x1x16x16xf32> to vector<16x16xf32>
    %156 = vector.shape_cast %147 : vector<16x16xf32> to vector<1x1x16x16xf32>
    tpu.vector_store %arg4[%c0_50, %c1_51, %c0_52, %c0_53], %156 {strides = array<i32>} : memref<1x4x16x16xf32, #tpu.memory_space<vmem>>, vector<1x1x16x16xf32>,
    %c0_54 = arith.constant 0 : index
    %c10 = arith.constant 10 : index
    %c0_55 = arith.constant 0 : index
    %c0_56 = arith.constant 0 : index
    %157 = vector.load %arg1[%c0_54, %c10, %c0_55, %c0_56] : memref<1x20x28x28xf32, #tpu.memory_space<vmem>>, vector<1x1x28x28xf32>
    %158 = vector.shape_cast %157 : vector<1x1x28x28xf32> to vector<28x28xf32>
    %159 = vector.extract_strided_slice %158 {offsets = [8, 12], sizes = [16, 16], strides = [1, 1]} : vector<28x28xf32> to vector<16x16xf32>
    %160 = arith.addf %0, %159 : vector<16x16xf32>
    %161 = vector.extract_strided_slice %158 {offsets = [3, 8], sizes = [16, 16], strides = [1, 1]} : vector<28x28xf32> to vector<16x16xf32>
    %162 = arith.addf %0, %161 : vector<16x16xf32>
    %163 = vector.extract_strided_slice %158 {offsets = [8, 6], sizes = [16, 16], strides = [1, 1]} : vector<28x28xf32> to vector<16x16xf32>
    %164 = arith.addf %0, %163 : vector<16x16xf32>
    %165 = vector.extract_strided_slice %158 {offsets = [3, 8], sizes = [16, 16], strides = [1, 1]} : vector<28x28xf32> to vector<16x16xf32>
    %166 = arith.addf %0, %165 : vector<16x16xf32>
    %167 = vector.extract_strided_slice %158 {offsets = [7, 7], sizes = [16, 16], strides = [1, 1]} : vector<28x28xf32> to vector<16x16xf32>
    %168 = arith.addf %0, %167 : vector<16x16xf32>
    %c0_57 = arith.constant 0 : index
    %c11 = arith.constant 11 : index
    %c0_58 = arith.constant 0 : index
    %c0_59 = arith.constant 0 : index
    %169 = vector.load %arg1[%c0_57, %c11, %c0_58, %c0_59] : memref<1x20x28x28xf32, #tpu.memory_space<vmem>>, vector<1x1x28x28xf32>
    %170 = vector.shape_cast %169 : vector<1x1x28x28xf32> to vector<28x28xf32>
    %171 = vector.extract_strided_slice %170 {offsets = [8, 0], sizes = [16, 16], strides = [1, 1]} : vector<28x28xf32> to vector<16x16xf32>
    %172 = arith.addf %160, %171 : vector<16x16xf32>
    %173 = vector.extract_strided_slice %170 {offsets = [0, 8], sizes = [16, 16], strides = [1, 1]} : vector<28x28xf32> to vector<16x16xf32>
    %174 = arith.addf %162, %173 : vector<16x16xf32>
    %175 = vector.extract_strided_slice %170 {offsets = [7, 7], sizes = [16, 16], strides = [1, 1]} : vector<28x28xf32> to vector<16x16xf32>
    %176 = arith.addf %0, %175 : vector<16x16xf32>
    %177 = vector.extract_strided_slice %170 {offsets = [8, 3], sizes = [16, 16], strides = [1, 1]} : vector<28x28xf32> to vector<16x16xf32>
    %178 = arith.addf %164, %177 : vector<16x16xf32>
    %179 = vector.extract_strided_slice %170 {offsets = [0, 8], sizes = [16, 16], strides = [1, 1]} : vector<28x28xf32> to vector<16x16xf32>
    %180 = arith.addf %166, %179 : vector<16x16xf32>
    %181 = vector.extract_strided_slice %170 {offsets = [9, 9], sizes = [16, 16], strides = [1, 1]} : vector<28x28xf32> to vector<16x16xf32>
    %182 = arith.addf %168, %181 : vector<16x16xf32>
    %c0_60 = arith.constant 0 : index
    %c12 = arith.constant 12 : index
    %c0_61 = arith.constant 0 : index
    %c0_62 = arith.constant 0 : index
    %183 = vector.load %arg1[%c0_60, %c12, %c0_61, %c0_62] : memref<1x20x28x28xf32, #tpu.memory_space<vmem>>, vector<1x1x28x28xf32>
    %184 = vector.shape_cast %183 : vector<1x1x28x28xf32> to vector<28x28xf32>
    %185 = vector.extract_strided_slice %184 {offsets = [8, 9], sizes = [16, 16], strides = [1, 1]} : vector<28x28xf32> to vector<16x16xf32>
    %186 = arith.addf %172, %185 : vector<16x16xf32>
    %187 = vector.extract_strided_slice %184 {offsets = [12, 8], sizes = [16, 16], strides = [1, 1]} : vector<28x28xf32> to vector<16x16xf32>
    %188 = arith.addf %174, %187 : vector<16x16xf32>
    %189 = vector.extract_strided_slice %184 {offsets = [9, 7], sizes = [16, 16], strides = [1, 1]} : vector<28x28xf32> to vector<16x16xf32>
    %190 = arith.addf %176, %189 : vector<16x16xf32>
    %191 = vector.extract_strided_slice %184 {offsets = [8, 12], sizes = [16, 16], strides = [1, 1]} : vector<28x28xf32> to vector<16x16xf32>
    %192 = arith.addf %178, %191 : vector<16x16xf32>
    %193 = vector.extract_strided_slice %184 {offsets = [6, 8], sizes = [16, 16], strides = [1, 1]} : vector<28x28xf32> to vector<16x16xf32>
    %194 = arith.addf %180, %193 : vector<16x16xf32>
    %195 = vector.extract_strided_slice %184 {offsets = [9, 7], sizes = [16, 16], strides = [1, 1]} : vector<28x28xf32> to vector<16x16xf32>
    %196 = arith.addf %182, %195 : vector<16x16xf32>
    %c0_63 = arith.constant 0 : index
    %c13 = arith.constant 13 : index
    %c0_64 = arith.constant 0 : index
    %c0_65 = arith.constant 0 : index
    %197 = vector.load %arg1[%c0_63, %c13, %c0_64, %c0_65] : memref<1x20x28x28xf32, #tpu.memory_space<vmem>>, vector<1x1x28x28xf32>
    %198 = vector.shape_cast %197 : vector<1x1x28x28xf32> to vector<28x28xf32>
    %199 = vector.extract_strided_slice %198 {offsets = [8, 6], sizes = [16, 16], strides = [1, 1]} : vector<28x28xf32> to vector<16x16xf32>
    %200 = arith.addf %186, %199 : vector<16x16xf32>
    %201 = vector.extract_strided_slice %198 {offsets = [6, 8], sizes = [16, 16], strides = [1, 1]} : vector<28x28xf32> to vector<16x16xf32>
    %202 = arith.addf %188, %201 : vector<16x16xf32>
    %203 = vector.extract_strided_slice %198 {offsets = [9, 9], sizes = [16, 16], strides = [1, 1]} : vector<28x28xf32> to vector<16x16xf32>
    %204 = arith.addf %190, %203 : vector<16x16xf32>
    %205 = vector.extract_strided_slice %198 {offsets = [8, 0], sizes = [16, 16], strides = [1, 1]} : vector<28x28xf32> to vector<16x16xf32>
    %206 = arith.addf %192, %205 : vector<16x16xf32>
    %207 = vector.extract_strided_slice %198 {offsets = [9, 8], sizes = [16, 16], strides = [1, 1]} : vector<28x28xf32> to vector<16x16xf32>
    %208 = arith.addf %194, %207 : vector<16x16xf32>
    %c0_66 = arith.constant 0 : index
    %c14 = arith.constant 14 : index
    %c0_67 = arith.constant 0 : index
    %c0_68 = arith.constant 0 : index
    %209 = vector.load %arg1[%c0_66, %c14, %c0_67, %c0_68] : memref<1x20x28x28xf32, #tpu.memory_space<vmem>>, vector<1x1x28x28xf32>
    %210 = vector.shape_cast %209 : vector<1x1x28x28xf32> to vector<28x28xf32>
    %211 = vector.extract_strided_slice %210 {offsets = [8, 3], sizes = [16, 16], strides = [1, 1]} : vector<28x28xf32> to vector<16x16xf32>
    %212 = arith.addf %200, %211 : vector<16x16xf32>
    %213 = vector.extract_strided_slice %210 {offsets = [9, 8], sizes = [16, 16], strides = [1, 1]} : vector<28x28xf32> to vector<16x16xf32>
    %214 = arith.addf %202, %213 : vector<16x16xf32>
    %215 = vector.extract_strided_slice %210 {offsets = [7, 9], sizes = [16, 16], strides = [1, 1]} : vector<28x28xf32> to vector<16x16xf32>
    %216 = arith.addf %204, %215 : vector<16x16xf32>
    %217 = vector.extract_strided_slice %210 {offsets = [8, 9], sizes = [16, 16], strides = [1, 1]} : vector<28x28xf32> to vector<16x16xf32>
    %218 = arith.addf %206, %217 : vector<16x16xf32>
    %219 = vector.extract_strided_slice %210 {offsets = [12, 8], sizes = [16, 16], strides = [1, 1]} : vector<28x28xf32> to vector<16x16xf32>
    %220 = arith.addf %208, %219 : vector<16x16xf32>
    %221 = vector.extract_strided_slice %210 {offsets = [7, 9], sizes = [16, 16], strides = [1, 1]} : vector<28x28xf32> to vector<16x16xf32>
    %222 = arith.addf %196, %221 : vector<16x16xf32>
    %223 = arith.maximumf %212, %218 : vector<16x16xf32>
    %224 = arith.maximumf %214, %220 : vector<16x16xf32>
    %225 = arith.maximumf %216, %222 : vector<16x16xf32>
    %c0_69 = arith.constant 0 : index
    %c2_70 = arith.constant 2 : index
    %c0_71 = arith.constant 0 : index
    %c0_72 = arith.constant 0 : index
    %226 = vector.load %arg2[%c0_69, %c2_70, %c0_71, %c0_72] : memref<1x4x16x16xf32, #tpu.memory_space<vmem>>, vector<1x1x16x16xf32>
    %227 = vector.shape_cast %226 : vector<1x1x16x16xf32> to vector<16x16xf32>
    %228 = vector.shape_cast %223 : vector<16x16xf32> to vector<1x1x16x16xf32>
    tpu.vector_store %arg2[%c0_69, %c2_70, %c0_71, %c0_72], %228 {strides = array<i32>} : memref<1x4x16x16xf32, #tpu.memory_space<vmem>>, vector<1x1x16x16xf32>,
    %c0_73 = arith.constant 0 : index
    %c2_74 = arith.constant 2 : index
    %c0_75 = arith.constant 0 : index
    %c0_76 = arith.constant 0 : index
    %229 = vector.load %arg3[%c0_73, %c2_74, %c0_75, %c0_76] : memref<1x4x16x16xf32, #tpu.memory_space<vmem>>, vector<1x1x16x16xf32>
    %230 = vector.shape_cast %229 : vector<1x1x16x16xf32> to vector<16x16xf32>
    %231 = vector.shape_cast %224 : vector<16x16xf32> to vector<1x1x16x16xf32>
    tpu.vector_store %arg3[%c0_73, %c2_74, %c0_75, %c0_76], %231 {strides = array<i32>} : memref<1x4x16x16xf32, #tpu.memory_space<vmem>>, vector<1x1x16x16xf32>,
    %c0_77 = arith.constant 0 : index
    %c2_78 = arith.constant 2 : index
    %c0_79 = arith.constant 0 : index
    %c0_80 = arith.constant 0 : index
    %232 = vector.load %arg4[%c0_77, %c2_78, %c0_79, %c0_80] : memref<1x4x16x16xf32, #tpu.memory_space<vmem>>, vector<1x1x16x16xf32>
    %233 = vector.shape_cast %232 : vector<1x1x16x16xf32> to vector<16x16xf32>
    %234 = vector.shape_cast %225 : vector<16x16xf32> to vector<1x1x16x16xf32>
    tpu.vector_store %arg4[%c0_77, %c2_78, %c0_79, %c0_80], %234 {strides = array<i32>} : memref<1x4x16x16xf32, #tpu.memory_space<vmem>>, vector<1x1x16x16xf32>,
    %c0_81 = arith.constant 0 : index
    %c15 = arith.constant 15 : index
    %c0_82 = arith.constant 0 : index
    %c0_83 = arith.constant 0 : index
    %235 = vector.load %arg1[%c0_81, %c15, %c0_82, %c0_83] : memref<1x20x28x28xf32, #tpu.memory_space<vmem>>, vector<1x1x28x28xf32>
    %236 = vector.shape_cast %235 : vector<1x1x28x28xf32> to vector<28x28xf32>
    %237 = vector.extract_strided_slice %236 {offsets = [8, 6], sizes = [16, 16], strides = [1, 1]} : vector<28x28xf32> to vector<16x16xf32>
    %238 = arith.addf %0, %237 : vector<16x16xf32>
    %239 = vector.extract_strided_slice %236 {offsets = [6, 8], sizes = [16, 16], strides = [1, 1]} : vector<28x28xf32> to vector<16x16xf32>
    %240 = arith.addf %0, %239 : vector<16x16xf32>
    %241 = vector.extract_strided_slice %236 {offsets = [7, 9], sizes = [16, 16], strides = [1, 1]} : vector<28x28xf32> to vector<16x16xf32>
    %242 = arith.addf %0, %241 : vector<16x16xf32>
    %243 = vector.extract_strided_slice %236 {offsets = [8, 9], sizes = [16, 16], strides = [1, 1]} : vector<28x28xf32> to vector<16x16xf32>
    %244 = arith.addf %0, %243 : vector<16x16xf32>
    %245 = vector.extract_strided_slice %236 {offsets = [9, 8], sizes = [16, 16], strides = [1, 1]} : vector<28x28xf32> to vector<16x16xf32>
    %246 = arith.addf %0, %245 : vector<16x16xf32>
    %247 = vector.extract_strided_slice %236 {offsets = [9, 7], sizes = [16, 16], strides = [1, 1]} : vector<28x28xf32> to vector<16x16xf32>
    %248 = arith.addf %0, %247 : vector<16x16xf32>
    %c0_84 = arith.constant 0 : index
    %c16 = arith.constant 16 : index
    %c0_85 = arith.constant 0 : index
    %c0_86 = arith.constant 0 : index
    %249 = vector.load %arg1[%c0_84, %c16, %c0_85, %c0_86] : memref<1x20x28x28xf32, #tpu.memory_space<vmem>>, vector<1x1x28x28xf32>
    %250 = vector.shape_cast %249 : vector<1x1x28x28xf32> to vector<28x28xf32>
    %251 = vector.extract_strided_slice %250 {offsets = [8, 3], sizes = [16, 16], strides = [1, 1]} : vector<28x28xf32> to vector<16x16xf32>
    %252 = arith.addf %238, %251 : vector<16x16xf32>
    %253 = vector.extract_strided_slice %250 {offsets = [3, 8], sizes = [16, 16], strides = [1, 1]} : vector<28x28xf32> to vector<16x16xf32>
    %254 = arith.addf %240, %253 : vector<16x16xf32>
    %255 = vector.extract_strided_slice %250 {offsets = [9, 7], sizes = [16, 16], strides = [1, 1]} : vector<28x28xf32> to vector<16x16xf32>
    %256 = arith.addf %242, %255 : vector<16x16xf32>
    %257 = vector.extract_strided_slice %250 {offsets = [8, 0], sizes = [16, 16], strides = [1, 1]} : vector<28x28xf32> to vector<16x16xf32>
    %258 = arith.addf %244, %257 : vector<16x16xf32>
    %259 = vector.extract_strided_slice %250 {offsets = [12, 8], sizes = [16, 16], strides = [1, 1]} : vector<28x28xf32> to vector<16x16xf32>
    %260 = arith.addf %246, %259 : vector<16x16xf32>
    %261 = vector.extract_strided_slice %250 {offsets = [9, 9], sizes = [16, 16], strides = [1, 1]} : vector<28x28xf32> to vector<16x16xf32>
    %262 = arith.addf %248, %261 : vector<16x16xf32>
    %c0_87 = arith.constant 0 : index
    %c17 = arith.constant 17 : index
    %c0_88 = arith.constant 0 : index
    %c0_89 = arith.constant 0 : index
    %263 = vector.load %arg1[%c0_87, %c17, %c0_88, %c0_89] : memref<1x20x28x28xf32, #tpu.memory_space<vmem>>, vector<1x1x28x28xf32>
    %264 = vector.shape_cast %263 : vector<1x1x28x28xf32> to vector<28x28xf32>
    %265 = vector.extract_strided_slice %264 {offsets = [8, 9], sizes = [16, 16], strides = [1, 1]} : vector<28x28xf32> to vector<16x16xf32>
    %266 = arith.addf %252, %265 : vector<16x16xf32>
    %267 = vector.extract_strided_slice %264 {offsets = [9, 8], sizes = [16, 16], strides = [1, 1]} : vector<28x28xf32> to vector<16x16xf32>
    %268 = arith.addf %254, %267 : vector<16x16xf32>
    %269 = vector.extract_strided_slice %264 {offsets = [9, 9], sizes = [16, 16], strides = [1, 1]} : vector<28x28xf32> to vector<16x16xf32>
    %270 = arith.addf %256, %269 : vector<16x16xf32>
    %271 = vector.extract_strided_slice %264 {offsets = [8, 3], sizes = [16, 16], strides = [1, 1]} : vector<28x28xf32> to vector<16x16xf32>
    %272 = arith.addf %258, %271 : vector<16x16xf32>
    %273 = vector.extract_strided_slice %264 {offsets = [0, 8], sizes = [16, 16], strides = [1, 1]} : vector<28x28xf32> to vector<16x16xf32>
    %274 = arith.addf %260, %273 : vector<16x16xf32>
    %c0_90 = arith.constant 0 : index
    %c18 = arith.constant 18 : index
    %c0_91 = arith.constant 0 : index
    %c0_92 = arith.constant 0 : index
    %275 = vector.load %arg1[%c0_90, %c18, %c0_91, %c0_92] : memref<1x20x28x28xf32, #tpu.memory_space<vmem>>, vector<1x1x28x28xf32>
    %276 = vector.shape_cast %275 : vector<1x1x28x28xf32> to vector<28x28xf32>
    %277 = vector.extract_strided_slice %276 {offsets = [8, 12], sizes = [16, 16], strides = [1, 1]} : vector<28x28xf32> to vector<16x16xf32>
    %278 = arith.addf %266, %277 : vector<16x16xf32>
    %279 = vector.extract_strided_slice %276 {offsets = [12, 8], sizes = [16, 16], strides = [1, 1]} : vector<28x28xf32> to vector<16x16xf32>
    %280 = arith.addf %268, %279 : vector<16x16xf32>
    %281 = vector.extract_strided_slice %276 {offsets = [8, 6], sizes = [16, 16], strides = [1, 1]} : vector<28x28xf32> to vector<16x16xf32>
    %282 = arith.addf %272, %281 : vector<16x16xf32>
    %283 = vector.extract_strided_slice %276 {offsets = [6, 8], sizes = [16, 16], strides = [1, 1]} : vector<28x28xf32> to vector<16x16xf32>
    %284 = arith.addf %274, %283 : vector<16x16xf32>
    %285 = vector.extract_strided_slice %276 {offsets = [7, 9], sizes = [16, 16], strides = [1, 1]} : vector<28x28xf32> to vector<16x16xf32>
    %286 = arith.addf %262, %285 : vector<16x16xf32>
    %c0_93 = arith.constant 0 : index
    %c19 = arith.constant 19 : index
    %c0_94 = arith.constant 0 : index
    %c0_95 = arith.constant 0 : index
    %287 = vector.load %arg1[%c0_93, %c19, %c0_94, %c0_95] : memref<1x20x28x28xf32, #tpu.memory_space<vmem>>, vector<1x1x28x28xf32>
    %288 = vector.shape_cast %287 : vector<1x1x28x28xf32> to vector<28x28xf32>
    %289 = vector.extract_strided_slice %288 {offsets = [8, 0], sizes = [16, 16], strides = [1, 1]} : vector<28x28xf32> to vector<16x16xf32>
    %290 = arith.addf %278, %289 : vector<16x16xf32>
    %291 = vector.extract_strided_slice %288 {offsets = [0, 8], sizes = [16, 16], strides = [1, 1]} : vector<28x28xf32> to vector<16x16xf32>
    %292 = arith.addf %280, %291 : vector<16x16xf32>
    %293 = vector.extract_strided_slice %288 {offsets = [7, 7], sizes = [16, 16], strides = [1, 1]} : vector<28x28xf32> to vector<16x16xf32>
    %294 = arith.addf %270, %293 : vector<16x16xf32>
    %295 = vector.extract_strided_slice %288 {offsets = [8, 12], sizes = [16, 16], strides = [1, 1]} : vector<28x28xf32> to vector<16x16xf32>
    %296 = arith.addf %282, %295 : vector<16x16xf32>
    %297 = vector.extract_strided_slice %288 {offsets = [3, 8], sizes = [16, 16], strides = [1, 1]} : vector<28x28xf32> to vector<16x16xf32>
    %298 = arith.addf %284, %297 : vector<16x16xf32>
    %299 = vector.extract_strided_slice %288 {offsets = [7, 7], sizes = [16, 16], strides = [1, 1]} : vector<28x28xf32> to vector<16x16xf32>
    %300 = arith.addf %286, %299 : vector<16x16xf32>
    %301 = arith.maximumf %290, %296 : vector<16x16xf32>
    %302 = arith.maximumf %292, %298 : vector<16x16xf32>
    %303 = arith.maximumf %294, %300 : vector<16x16xf32>
    %c0_96 = arith.constant 0 : index
    %c3_97 = arith.constant 3 : index
    %c0_98 = arith.constant 0 : index
    %c0_99 = arith.constant 0 : index
    %304 = vector.load %arg2[%c0_96, %c3_97, %c0_98, %c0_99] : memref<1x4x16x16xf32, #tpu.memory_space<vmem>>, vector<1x1x16x16xf32>
    %305 = vector.shape_cast %304 : vector<1x1x16x16xf32> to vector<16x16xf32>
    %306 = vector.shape_cast %301 : vector<16x16xf32> to vector<1x1x16x16xf32>
    tpu.vector_store %arg2[%c0_96, %c3_97, %c0_98, %c0_99], %306 {strides = array<i32>} : memref<1x4x16x16xf32, #tpu.memory_space<vmem>>, vector<1x1x16x16xf32>,
    %c0_100 = arith.constant 0 : index
    %c3_101 = arith.constant 3 : index
    %c0_102 = arith.constant 0 : index
    %c0_103 = arith.constant 0 : index
    %307 = vector.load %arg3[%c0_100, %c3_101, %c0_102, %c0_103] : memref<1x4x16x16xf32, #tpu.memory_space<vmem>>, vector<1x1x16x16xf32>
    %308 = vector.shape_cast %307 : vector<1x1x16x16xf32> to vector<16x16xf32>
    %309 = vector.shape_cast %302 : vector<16x16xf32> to vector<1x1x16x16xf32>
    tpu.vector_store %arg3[%c0_100, %c3_101, %c0_102, %c0_103], %309 {strides = array<i32>} : memref<1x4x16x16xf32, #tpu.memory_space<vmem>>, vector<1x1x16x16xf32>,
    %c0_104 = arith.constant 0 : index
    %c3_105 = arith.constant 3 : index
    %c0_106 = arith.constant 0 : index
    %c0_107 = arith.constant 0 : index
    %310 = vector.load %arg4[%c0_104, %c3_105, %c0_106, %c0_107] : memref<1x4x16x16xf32, #tpu.memory_space<vmem>>, vector<1x1x16x16xf32>
    %311 = vector.shape_cast %310 : vector<1x1x16x16xf32> to vector<16x16xf32>
    %312 = vector.shape_cast %303 : vector<16x16xf32> to vector<1x1x16x16xf32>
    tpu.vector_store %arg4[%c0_104, %c3_105, %c0_106, %c0_107], %312 {strides = array<i32>} : memref<1x4x16x16xf32, #tpu.memory_space<vmem>>, vector<1x1x16x16xf32>,
    return
  }
  func.func @transform_0(%arg0: i32) -> (i32, i32, i32, i32) {
    %c0_i32 = arith.constant 0 : i32
    %c0_i32_0 = arith.constant 0 : i32
    %c0_i32_1 = arith.constant 0 : i32
    %c0_i32_2 = arith.constant 0 : i32
    return %arg0, %c0_i32, %c0_i32_0, %c0_i32_1 : i32, i32, i32, i32
  }
  func.func @transform_1(%arg0: i32) -> (i32, i32, i32, i32) {
    %c0_i32 = arith.constant 0 : i32
    %c0_i32_0 = arith.constant 0 : i32
    %c0_i32_1 = arith.constant 0 : i32
    %c0_i32_2 = arith.constant 0 : i32
    return %arg0, %c0_i32, %c0_i32_0, %c0_i32_1 : i32, i32, i32, i32
  }
  func.func @transform_2(%arg0: i32) -> (i32, i32, i32, i32) {
    %c0_i32 = arith.constant 0 : i32
    %c0_i32_0 = arith.constant 0 : i32
    %c0_i32_1 = arith.constant 0 : i32
    %c0_i32_2 = arith.constant 0 : i32
    return %arg0, %c0_i32, %c0_i32_0, %c0_i32_1 : i32, i32, i32, i32
  }
  func.func @transform_3(%arg0: i32) -> (i32, i32, i32, i32) {
    %c0_i32 = arith.constant 0 : i32
    %c0_i32_0 = arith.constant 0 : i32
    %c0_i32_1 = arith.constant 0 : i32
    %c0_i32_2 = arith.constant 0 : i32
    return %arg0, %c0_i32, %c0_i32_0, %c0_i32_1 : i32, i32, i32, i32
  }
}

</mosaic_0001>

<llo_original>
// kernel: forward.1
$region0: #{forward.1}
  #allocation0 [shape = 'u32[]', space=smem, size = 0x4, offset = 0x4, fixed_abs, tag = 'smem constant byte address 0x4 - core index']
  #allocation1 [shape = 'u32[72,128]{1,0:T(1,128)}', space=vmem, size = 0x9000, scoped, tag = 'internal scratch']
  %s0 = inlined_call_operand.vmem [shape: f32[2,20,28,28], index: 0, kind: input, shape index: {}]
  %s1 = inlined_call_operand.hbm [shape: f32[2,4,16,16], index: 1, kind: output, shape index: {0}]
  %s2 = inlined_call_operand.hbm [shape: f32[2,4,16,16], index: 2, kind: output, shape index: {1}]
  %s3 = inlined_call_operand.hbm [shape: f32[2,4,16,16], index: 3, kind: output, shape index: {2}]
  %4 = xla_tuple %s1, %s2, %s3
  %s5 = sld [smem:[#allocation0]]
  $region53: #{forward.1} parent=0
    _
  %s7 = ssub.s32 1, %s5
  %s8 = scalar_select 0, %s7, %s5
  $region1: #{forward.1} parent=0
    #allocation2 [shape = 'u8[65536]{0}', space=vmem, size = 0x10000, scoped, tag = 'output window, operand 0']
    #allocation3 [shape = 's32[2]{0}', space=sflag, size = 0x8, scoped, tag = 'scoped memory for forward.1']
    #allocation4 [shape = 'u8[65536]{0}', space=vmem, size = 0x10000, scoped, tag = 'output window, operand 1']
    #allocation5 [shape = 's32[2]{0}', space=sflag, size = 0x8, scoped, tag = 'scoped memory for forward.1']
    #allocation6 [shape = 'u8[65536]{0}', space=vmem, size = 0x10000, scoped, tag = 'output window, operand 2']
    %9 = vsyncpa [#allocation3], 0
    %s10 = scalar_lea.sflag [#allocation3], 1
    %11 = vsyncpa %s10, 0
    %12 = vsyncpa [#allocation5], 0
    %s13 = scalar_lea.sflag [#allocation5], 1
    %14 = vsyncpa %s13, 0
    loop: start=0, step=1, limit=4
    $region2: #{forward.1} parent=1 // loop_pre_header
      _
    $region3: #{forward.1} parent=1 // loop_header
      %s16 = sphi 0, %s20
      %p17 = scmp.ge.s32.totalorder %s16, 4
      %s26 = sphi 0, %s28
      %s29 = sphi 0, %s26
      %s30 = sphi 0, %s29
      %s46 = sphi 0, %s30
      %s52 = sphi 0, %s54
      %s55 = sphi 0, %s52
      %s56 = sphi 0, %s55
      %s72 = sphi 0, %s56
      %s78 = sphi 0, %s80
      %s81 = sphi 0, %s78
      %s82 = sphi 0, %s81
      %s98 = sphi 0, %s82
      %s104 = sphi 0, %s106
      %s107 = sphi 0, %s104
      %s108 = sphi 0, %s107
      %s124 = sphi 0, %s108
    $region4: #{forward.1} parent=1 // loop_header_branch
      %19 = sbr.rel (%p17) target = $region8
    $region5: #{forward.1} parent=1 // loop_body
      %s21 = ssub.s32 %s16, 1
      %s22 = ssub.s32 %s16, 2
      %s23 = sadd.s32 %s16, 1
      %s24 = ssub.s32 %s16, %s23
      %p25 = scmp.eq.s32.totalorder %s24, 0
      %s27 = sadd.s32 %s26, 1
      %s28 = scalar_select %p25, %s26, %s27
      %p31 = pneg %p25
      %p32 = scmp.eq.s32.totalorder %s16, 1
      %p33 = por %p31, %p32
      %p34 = scmp.ne.s32.totalorder %s26, %s29
      %p35 = scmp.eq.s32.totalorder %s16, 0
      %p36 = por %p34, %p35
      %p37 = scmp.ne.s32.totalorder %s26, %s29
      %p38 = scmp.eq.s32.totalorder %s21, 1
      %p39 = por %p37, %p38
      %p40 = scmp.ne.s32.totalorder %s29, %s30
      %p41 = scmp.eq.s32.totalorder %s21, 0
      %p42 = por %p40, %p41
      %p43 = scmp.ne.s32.totalorder %s29, %s30
      %p44 = scmp.eq.s32.totalorder %s22, 1
      %p45 = por %p43, %p44
      %p47 = scmp.ne.s32.totalorder %s30, %s46
      %p48 = scmp.eq.s32.totalorder %s22, 0
      %p49 = por %p47, %p48
      %s50 = ssub.s32 %s16, %s23
      %p51 = scmp.eq.s32.totalorder %s50, 0
      %s53 = sadd.s32 %s52, 1
      %s54 = scalar_select %p51, %s52, %s53
      %p57 = pneg %p51
      %p58 = scmp.eq.s32.totalorder %s16, 1
      %p59 = por %p57, %p58
      %p60 = scmp.ne.s32.totalorder %s52, %s55
      %p61 = scmp.eq.s32.totalorder %s16, 0
      %p62 = por %p60, %p61
      %p63 = scmp.ne.s32.totalorder %s52, %s55
      %p64 = scmp.eq.s32.totalorder %s21, 1
      %p65 = por %p63, %p64
      %p66 = scmp.ne.s32.totalorder %s55, %s56
      %p67 = scmp.eq.s32.totalorder %s21, 0
      %p68 = por %p66, %p67
      %p69 = scmp.ne.s32.totalorder %s55, %s56
      %p70 = scmp.eq.s32.totalorder %s22, 1
      %p71 = por %p69, %p70
      %p73 = scmp.ne.s32.totalorder %s56, %s72
      %p74 = scmp.eq.s32.totalorder %s22, 0
      %p75 = por %p73, %p74
      %s76 = ssub.s32 %s16, %s23
      %p77 = scmp.eq.s32.totalorder %s76, 0
      %s79 = sadd.s32 %s78, 1
      %s80 = scalar_select %p77, %s78, %s79
      %p83 = pneg %p77
      %p84 = scmp.eq.s32.totalorder %s16, 1
      %p85 = por %p83, %p84
      %p86 = scmp.ne.s32.totalorder %s78, %s81
      %p87 = scmp.eq.s32.totalorder %s16, 0
      %p88 = por %p86, %p87
      %p89 = scmp.ne.s32.totalorder %s78, %s81
      %p90 = scmp.eq.s32.totalorder %s21, 1
      %p91 = por %p89, %p90
      %p92 = scmp.ne.s32.totalorder %s81, %s82
      %p93 = scmp.eq.s32.totalorder %s21, 0
      %p94 = por %p92, %p93
      %p95 = scmp.ne.s32.totalorder %s81, %s82
      %p96 = scmp.eq.s32.totalorder %s22, 1
      %p97 = por %p95, %p96
      %p99 = scmp.ne.s32.totalorder %s82, %s98
      %p100 = scmp.eq.s32.totalorder %s22, 0
      %p101 = por %p99, %p100
      %s102 = ssub.s32 %s16, %s23
      %p103 = scmp.eq.s32.totalorder %s102, 0
      %s105 = sadd.s32 %s104, 1
      %s106 = scalar_select %p103, %s104, %s105
      %p109 = pneg %p103
      %p110 = scmp.eq.s32.totalorder %s16, 1
      %p111 = por %p109, %p110
      %p112 = scmp.ne.s32.totalorder %s104, %s107
      %p113 = scmp.eq.s32.totalorder %s16, 0
      %p114 = por %p112, %p113
      %p115 = scmp.ne.s32.totalorder %s104, %s107
      %p116 = scmp.eq.s32.totalorder %s21, 1
      %p117 = por %p115, %p116
      %p118 = scmp.ne.s32.totalorder %s107, %s108
      %p119 = scmp.eq.s32.totalorder %s21, 0
      %p120 = por %p118, %p119
      %p121 = scmp.ne.s32.totalorder %s107, %s108
      %p122 = scmp.eq.s32.totalorder %s22, 1
      %p123 = por %p121, %p122
      %p125 = scmp.ne.s32.totalorder %s108, %s124
      %p126 = scmp.eq.s32.totalorder %s22, 0
      %p127 = por %p125, %p126
      %p128 = scmp.le.s32.totalorder 1, %s16
      %p129 = scmp.lt.s32.totalorder %s16, 3
      %p130 = pnand %p128, %p129
      %p131 = pneg %p130
      // Predicated region
      $region9: #{forward.1} parent=5 // pred_check
        _
      $region10: #{forward.1} parent=5 // pred_check_branch
        %133 = sbr.rel (%p130) target = $region12
      $region11: #{forward.1} parent=5 // pred_region
        %s134 = ssub.s32 %s16, 1
      $region12: #{forward.1} parent=5 // pred_fallthru
        _
      %p135 = scmp.lt.s32.totalorder %s16, 2
      // Predicated region
      $region13: #{forward.1} parent=5 // pred_check
        %p136 = pneg %p135
      $region14: #{forward.1} parent=5 // pred_check_branch
        %138 = sbr.rel (%p136) target = $region16
      $region15: #{forward.1} parent=5 // pred_region
        // Predicated region
        $region17: #{forward.1} parent=15 // pred_check
          %p139 = pneg %p36
        $region18: #{forward.1} parent=15 // pred_check_branch
          %141 = sbr.rel (%p139) target = $region20
        $region19: #{forward.1} parent=15 // pred_region
          %p142 = scmp.lt.s32.totalorder %s16, 1
          %s143 = scalar_select %p142, %s16, 1
          %s144 = smul.addr %s143, 80
          %s145 = smul.addr %s144, 8
          %s146 = scalar_lea.vmem %s0, %s145
        $region20: #{forward.1} parent=15 // pred_fallthru
          _
      $region16: #{forward.1} parent=5 // pred_fallthru
        _
      %p147 = scmp.le.s32.totalorder 1, %s16
      %p148 = scmp.lt.s32.totalorder %s16, 3
      %p149 = pnand %p147, %p148
      %p150 = pneg %p149
      // Predicated region
      $region21: #{forward.1} parent=5 // pred_check
        _
      $region22: #{forward.1} parent=5 // pred_check_branch
        %152 = sbr.rel (%p149) target = $region24
      $region23: #{forward.1} parent=5 // pred_region
        %s153 = ssub.s32 %s16, 1
        %p154 = scmp.lt.s32.totalorder %s21, 1
        %s155 = scalar_select %p154, %s21, 1
        %s156 = smul.addr %s155, 80
        %s157 = smul.addr %s156, 8
        %s158 = scalar_lea.vmem %s0, %s157
        %p159 = pneg %p42
        %p160 = pneg %p39
        %p161 = pneg %p68
        %p162 = pneg %p65
        %s163 = sand.u32 %s55, 1
        %s164 = scalar_lea.sflag [#allocation3], %s163
        %s165 = sand.u32 %s55, 1
        %s166 = smul.addr %s165, 64
        %s167 = scalar_lea.vmem [#allocation2], %s166
        %p168 = pneg %p94
        %p169 = pneg %p91
        %s170 = sand.u32 %s21, 1
        %s171 = scalar_lea.sflag [#allocation5], %s170
        %s172 = sand.u32 %s81, 1
        %s173 = smul.addr %s172, 64
        %s174 = scalar_lea.vmem [#allocation4], %s173
        %p175 = pneg %p120
        %p176 = pneg %p117
        %s177 = sand.u32 %s21, 1
        %s178 = scalar_lea.sflag [#allocation5], %s177
        %s179 = sand.u32 %s107, 1
        %s180 = smul.addr %s179, 64
        %s181 = scalar_lea.vmem [#allocation6], %s180
        %p182 = scmp.lt.s32.totalorder %s21, 1
        %s183 = scalar_select %p182, %s21, 1
        %s184 = smul.addr %s183, 80
        %s185 = smul.addr %s184, 8
        %s186 = scalar_lea.vmem %s0, %s185
        %v187 = vld [vmem:[%s186] sm:$0xff]
        %v188 = vld [vmem:[%s186 + $0x8] sm:$0xff]
        %v189 = vld [vmem:[%s186 + $0x10] sm:$0xff]
        %v190 = vadd.f32 %v188, 0.0
        %v191 = vadd.f32 %v189, 0.0
        %v192 = vadd.f32 %v187, 0.0
        %s193 = scalar_lea.vmem %s186, 32
        %v194 = vld [vmem:[%s193] sm:$0xff]
        %v195 = vld [vmem:[%s193 + $0x8] sm:$0xff]
        %v196 = vld [vmem:[%s193 + $0x10] sm:$0xff]
        %v197 = vld [vmem:[%s193 + $0x18] sm:$0xf]
        %200 = vrot.lane.b32.xlu0 %v195, 3
        %v201 = vpop.permute.xlu0 %200
        %202 = vrot.lane.b32.xlu0 %v196, 3
        %v203 = vpop.permute.xlu0 %202
        %v206 = vadd.f32 %v190, %v201
        %v207 = vadd.f32 %v191, %v203
        %vm209 = vcmask 1041408
        %v210 = vrot.slane %v194, 6
        %v211 = vrot.slane %v195, 6
        %v212 = vsel %vm209, %v210, %v211
        %v213 = vrot.slane %v196, 6
        %v214 = vsel %vm209, %v211, %v213
        %v217 = vadd.f32 %v192, %v212
        %v218 = vadd.f32 %v190, %v214
        %219 = vrot.lane.b32.xlu0 %v195, 125
        %v220 = vpop.permute.xlu0 %219
        %221 = vrot.lane.b32.xlu0 %v196, 125
        %v222 = vpop.permute.xlu0 %221
        %v225 = vadd.f32 %v190, %v220
        %v226 = vadd.f32 %v191, %v222
        %vm228 = vcmask 1044480
        %v229 = vrot.slane %v195, 3
        %v230 = vrot.slane %v196, 3
        %v231 = vsel %vm228, %v229, %v230
        %v232 = vrot.slane %v197, 3
        %v233 = vsel %vm228, %v230, %v232
        %v237 = vadd.f32 %v192, %v229
        %v238 = vadd.f32 %v190, %v231
        %v239 = vadd.f32 %v191, %v233
        %vm240 = vcmask 1045504
        %v241 = vrot.slane %v195, 2
        %v242 = vrot.slane %v196, 2
        %v243 = vsel %vm240, %v241, %v242
        %v244 = vrot.slane %v197, 2
        %v245 = vsel %vm240, %v242, %v244
        %246 = vrot.lane.b32.xlu0 %v241, 2
        %v247 = vpop.permute.xlu0 %246
        %248 = vrot.lane.b32.xlu0 %v243, 2
        %v249 = vpop.permute.xlu0 %248
        %250 = vrot.lane.b32.xlu0 %v245, 2
        %v251 = vpop.permute.xlu0 %250
        %v255 = vadd.f32 %v192, %v247
        %v256 = vadd.f32 %v190, %v249
        %v257 = vadd.f32 %v191, %v251
        %s258 = scalar_lea.vmem %s186, 64
        %v259 = vld [vmem:[%s258] sm:$0xff]
        %v260 = vld [vmem:[%s258 + $0x8] sm:$0xff]
        %v261 = vld [vmem:[%s258 + $0x10] sm:$0xff]
        %v262 = vld [vmem:[%s258 + $0x18] sm:$0xf]
        %265 = vrot.lane.b32.xlu0 %v260, 119
        %v266 = vpop.permute.xlu0 %265
        %267 = vrot.lane.b32.xlu0 %v261, 119
        %v268 = vpop.permute.xlu0 %267
        %v271 = vadd.f32 %v206, %v266
        %v272 = vadd.f32 %v207, %v268
        %vm274 = vcmask 1046528
        %v275 = vrot.slane %v260, 1
        %v276 = vrot.slane %v261, 1
        %v277 = vsel %vm274, %v275, %v276
        %v278 = vrot.slane %v262, 1
        %v279 = vsel %vm274, %v276, %v278
        %v282 = vadd.f32 %v217, %v277
        %v283 = vadd.f32 %v218, %v279
        %v284 = vrot.slane %v260, 2
        %v285 = vrot.slane %v261, 2
        %v286 = vsel %vm240, %v284, %v285
        %v287 = vrot.slane %v262, 2
        %v288 = vsel %vm240, %v285, %v287
        %289 = vrot.lane.b32.xlu0 %v284, 126
        %v290 = vpop.permute.xlu0 %289
        %291 = vrot.lane.b32.xlu0 %v286, 126
        %v292 = vpop.permute.xlu0 %291
        %293 = vrot.lane.b32.xlu0 %v288, 126
        %v294 = vpop.permute.xlu0 %293
        %v298 = vadd.f32 %v192, %v290
        %v299 = vadd.f32 %v190, %v292
        %v300 = vadd.f32 %v191, %v294
        %301 = vrot.lane.b32.xlu0 %v260, 122
        %v302 = vpop.permute.xlu0 %301
        %303 = vrot.lane.b32.xlu0 %v261, 122
        %v304 = vpop.permute.xlu0 %303
        %v307 = vadd.f32 %v225, %v302
        %v308 = vadd.f32 %v226, %v304
        %v310 = vrot.slane %v259, 2
        %v311 = vsel %vm240, %v310, %v284
        %v315 = vadd.f32 %v237, %v310
        %v316 = vadd.f32 %v238, %v311
        %v317 = vadd.f32 %v239, %v284
        %318 = vrot.lane.b32.xlu0 %v259, 2
        %v319 = vpop.permute.xlu0 %318
        %320 = vrot.lane.b32.xlu0 %v260, 2
        %v321 = vpop.permute.xlu0 %320
        %322 = vrot.lane.b32.xlu0 %v261, 2
        %v323 = vpop.permute.xlu0 %322
        %v327 = vadd.f32 %v255, %v319
        %v328 = vadd.f32 %v256, %v321
        %v329 = vadd.f32 %v257, %v323
        %s330 = scalar_lea.vmem %s186, 96
        %v331 = vld [vmem:[%s330] sm:$0xff]
        %v332 = vld [vmem:[%s330 + $0x8] sm:$0xff]
        %v333 = vld [vmem:[%s330 + $0x10] sm:$0xff]
        %v334 = vld [vmem:[%s330 + $0x18] sm:$0xf]
        %337 = vrot.lane.b32.xlu0 %v332, 125
        %v338 = vpop.permute.xlu0 %337
        %339 = vrot.lane.b32.xlu0 %v333, 125
        %v340 = vpop.permute.xlu0 %339
        %v343 = vadd.f32 %v271, %v338
        %v344 = vadd.f32 %v272, %v340
        %v346 = vrot.slane %v331, 3
        %v347 = vrot.slane %v332, 3
        %v348 = vsel %vm228, %v346, %v347
        %v349 = vrot.slane %v333, 3
        %v350 = vsel %vm228, %v347, %v349
        %v353 = vadd.f32 %v282, %v348
        %v354 = vadd.f32 %v283, %v350
        %355 = vrot.lane.b32.xlu0 %v331, 126
        %v356 = vpop.permute.xlu0 %355
        %357 = vrot.lane.b32.xlu0 %v332, 126
        %v358 = vpop.permute.xlu0 %357
        %359 = vrot.lane.b32.xlu0 %v333, 126
        %v360 = vpop.permute.xlu0 %359
        %v364 = vadd.f32 %v298, %v356
        %v365 = vadd.f32 %v299, %v358
        %v366 = vadd.f32 %v300, %v360
        %367 = vrot.lane.b32.xlu0 %v332, 116
        %v368 = vpop.permute.xlu0 %367
        %369 = vrot.lane.b32.xlu0 %v333, 116
        %v370 = vpop.permute.xlu0 %369
        %v373 = vadd.f32 %v307, %v368
        %v374 = vadd.f32 %v308, %v370
        %v376 = vrot.slane %v332, 6
        %v377 = vrot.slane %v333, 6
        %v378 = vsel %vm209, %v376, %v377
        %v379 = vrot.slane %v334, 6
        %v380 = vsel %vm209, %v377, %v379
        %v384 = vadd.f32 %v315, %v376
        %v385 = vadd.f32 %v316, %v378
        %v386 = vadd.f32 %v317, %v380
        %s387 = scalar_lea.vmem %s186, 128
        %v388 = vld [vmem:[%s387] sm:$0xff]
        %v389 = vld [vmem:[%s387 + $0x8] sm:$0xff]
        %v390 = vld [vmem:[%s387 + $0x10] sm:$0xff]
        %v391 = vld [vmem:[%s387 + $0x18] sm:$0xf]
        %394 = vrot.lane.b32.xlu0 %v389, 122
        %v395 = vpop.permute.xlu0 %394
        %396 = vrot.lane.b32.xlu0 %v390, 122
        %v397 = vpop.permute.xlu0 %396
        %v400 = vadd.f32 %v343, %v395
        %v401 = vadd.f32 %v344, %v397
        %vm403 = vcmask 1043456
        %v404 = vrot.slane %v389, 4
        %v405 = vrot.slane %v390, 4
        %v406 = vsel %vm403, %v404, %v405
        %v407 = vrot.slane %v391, 4
        %v408 = vsel %vm403, %v405, %v407
        %v411 = vadd.f32 %v353, %v406
        %v412 = vadd.f32 %v354, %v408
        %v413 = vrot.slane %v389, 2
        %v414 = vrot.slane %v390, 2
        %v415 = vsel %vm240, %v413, %v414
        %v416 = vrot.slane %v391, 2
        %v417 = vsel %vm240, %v414, %v416
        %v421 = vadd.f32 %v364, %v413
        %v422 = vadd.f32 %v365, %v415
        %v423 = vadd.f32 %v366, %v417
        %424 = vrot.lane.b32.xlu0 %v389, 119
        %v425 = vpop.permute.xlu0 %424
        %426 = vrot.lane.b32.xlu0 %v390, 119
        %v427 = vpop.permute.xlu0 %426
        %v430 = vadd.f32 %v373, %v425
        %v431 = vadd.f32 %v374, %v427
        %vm433 = vcmask 1042432
        %v434 = vrot.slane %v388, 5
        %v435 = vrot.slane %v389, 5
        %v436 = vsel %vm433, %v434, %v435
        %v437 = vrot.slane %v390, 5
        %v438 = vsel %vm433, %v435, %v437
        %v442 = vadd.f32 %v384, %v434
        %v443 = vadd.f32 %v385, %v436
        %v444 = vadd.f32 %v386, %v438
        %v445 = vadd.f32 %v327, %v413
        %v446 = vadd.f32 %v328, %v415
        %v447 = vadd.f32 %v329, %v417
        %450 = vrot.lane.b32.xlu0 %v430, 3
        %v451 = vpop.permute.xlu0 %450
        %452 = vrot.lane.b32.xlu0 %v431, 3
        %v453 = vpop.permute.xlu0 %452
        %v456 = vmax.f32 %v400, %v451
        %v457 = vmax.f32 %v401, %v453
        %v461 = vrot.slane %v442, 6
        %v462 = vrot.slane %v443, 6
        %v463 = vsel %vm209, %v461, %v462
        %v464 = vrot.slane %v444, 6
        %v465 = vsel %vm209, %v462, %v464
        %v468 = vmax.f32 %v411, %v463
        %v469 = vmax.f32 %v412, %v465
        %473 = vrot.lane.b32.xlu0 %v445, 126
        %v474 = vpop.permute.xlu0 %473
        %475 = vrot.lane.b32.xlu0 %v446, 126
        %v476 = vpop.permute.xlu0 %475
        %477 = vrot.lane.b32.xlu0 %v447, 126
        %v478 = vpop.permute.xlu0 %477
        %v482 = vmax.f32 %v421, %v474
        %v483 = vmax.f32 %v422, %v476
        %v484 = vmax.f32 %v423, %v478
        %487 = vrot.lane.b32.xlu0 %v456, 125
        %v488 = vpop.permute.xlu0 %487
        %489 = vrot.lane.b32.xlu0 %v457, 125
        %v490 = vpop.permute.xlu0 %489
        %vm493 = vcmask 130048
        %494 = vst.msk [vmem:[%s167] sm:$0xff] %vm493, %v488
        %495 = vst.msk [vmem:[%s167 + $0x8] sm:$0xff] %vm493, %v490
        %498 = vrot.lane.b32.xlu0 %v468, 120
        %v499 = vpop.permute.xlu0 %498
        %500 = vrot.lane.b32.xlu0 %v469, 120
        %v501 = vpop.permute.xlu0 %500
        %504 = vst.msk [vmem:[%s174] sm:$0xff] %vm493, %v499
        %505 = vst.msk [vmem:[%s174 + $0x8] sm:$0xff] %vm493, %v501
        %509 = vrot.lane.b32.xlu0 %v482, 121
        %v510 = vpop.permute.xlu0 %509
        %511 = vrot.lane.b32.xlu0 %v483, 121
        %v512 = vpop.permute.xlu0 %511
        %513 = vrot.lane.b32.xlu0 %v484, 121
        %v514 = vpop.permute.xlu0 %513
        %vm518 = vcmask 130055
        %519 = vst.msk [vmem:[%s181 - $0x7] sm:$0x80] %vm518, %v510
        %520 = vst.msk [vmem:[%s181 + $0x1] sm:$0xff] %vm493, %v512
        %vm521 = vcmask 129024
        %522 = vst.msk [vmem:[%s181 + $0x9] sm:$0x7f] %vm521, %v514
        %s523 = scalar_lea.vmem %s186, 160
        %v524 = vld [vmem:[%s523] sm:$0xff]
        %v525 = vld [vmem:[%s523 + $0x8] sm:$0xff]
        %v526 = vld [vmem:[%s523 + $0x10] sm:$0xff]
        %v527 = vld [vmem:[%s523 + $0x18] sm:$0xf]
        %v528 = vadd.f32 %v525, 0.0
        %v529 = vadd.f32 %v526, 0.0
        %v530 = vadd.f32 %v527, 0.0
        %v531 = vadd.f32 %v524, 0.0
        %s532 = scalar_lea.vmem %s186, 192
        %v533 = vld [vmem:[%s532] sm:$0xff]
        %v534 = vld [vmem:[%s532 + $0x8] sm:$0xff]
        %v535 = vld [vmem:[%s532 + $0x10] sm:$0xff]
        %v536 = vld [vmem:[%s532 + $0x18] sm:$0xf]
        %539 = vrot.lane.b32.xlu0 %v534, 122
        %v540 = vpop.permute.xlu0 %539
        %541 = vrot.lane.b32.xlu0 %v535, 122
        %v542 = vpop.permute.xlu0 %541
        %v545 = vadd.f32 %v528, %v540
        %v546 = vadd.f32 %v529, %v542
        %vm548 = vcmask 1040384
        %v549 = vrot.slane %v533, 7
        %v550 = vrot.slane %v534, 7
        %v551 = vsel %vm548, %v549, %v550
        %v555 = vadd.f32 %v528, %v549
        %v556 = vadd.f32 %v529, %v551
        %v557 = vadd.f32 %v530, %v550
        %v559 = vrot.slane %v534, 2
        %v560 = vrot.slane %v535, 2
        %v561 = vsel %vm240, %v559, %v560
        %v562 = vrot.slane %v536, 2
        %v563 = vsel %vm240, %v560, %v562
        %v567 = vadd.f32 %v531, %v559
        %v568 = vadd.f32 %v528, %v561
        %v569 = vadd.f32 %v529, %v563
        %v570 = vrot.slane %v533, 5
        %v571 = vrot.slane %v534, 5
        %v572 = vsel %vm433, %v570, %v571
        %v576 = vadd.f32 %v531, %v570
        %v577 = vadd.f32 %v528, %v572
        %v578 = vadd.f32 %v529, %v571
        %579 = vrot.lane.b32.xlu0 %v559, 2
        %v580 = vpop.permute.xlu0 %579
        %581 = vrot.lane.b32.xlu0 %v561, 2
        %v582 = vpop.permute.xlu0 %581
        %583 = vrot.lane.b32.xlu0 %v563, 2
        %v584 = vpop.permute.xlu0 %583
        %v588 = vadd.f32 %v531, %v580
        %v589 = vadd.f32 %v528, %v582
        %v590 = vadd.f32 %v529, %v584
        %s591 = scalar_lea.vmem %s186, 224
        %v592 = vld [vmem:[%s591] sm:$0xff]
        %v593 = vld [vmem:[%s591 + $0x8] sm:$0xff]
        %v594 = vld [vmem:[%s591 + $0x10] sm:$0xff]
        %v595 = vld [vmem:[%s591 + $0x18] sm:$0xf]
        %598 = vrot.lane.b32.xlu0 %v593, 125
        %v599 = vpop.permute.xlu0 %598
        %600 = vrot.lane.b32.xlu0 %v594, 125
        %v601 = vpop.permute.xlu0 %600
        %v604 = vadd.f32 %v545, %v599
        %v605 = vadd.f32 %v546, %v601
        %v607 = vrot.slane %v592, 2
        %v608 = vrot.slane %v593, 2
        %v609 = vsel %vm240, %v607, %v608
        %v610 = vrot.slane %v594, 2
        %v611 = vsel %vm240, %v608, %v610
        %v615 = vadd.f32 %v555, %v609
        %v616 = vadd.f32 %v556, %v611
        %v617 = vadd.f32 %v557, %v610
        %618 = vrot.lane.b32.xlu0 %v593, 3
        %v619 = vpop.permute.xlu0 %618
        %620 = vrot.lane.b32.xlu0 %v594, 3
        %v621 = vpop.permute.xlu0 %620
        %v624 = vadd.f32 %v545, %v619
        %v625 = vadd.f32 %v546, %v621
        %v627 = vrot.slane %v593, 1
        %v628 = vrot.slane %v594, 1
        %v629 = vsel %vm274, %v627, %v628
        %v630 = vrot.slane %v595, 1
        %v631 = vsel %vm274, %v628, %v630
        %v635 = vadd.f32 %v576, %v629
        %v636 = vadd.f32 %v577, %v631
        %v637 = vadd.f32 %v578, %v630
        %638 = vrot.lane.b32.xlu0 %v592, 2
        %v639 = vpop.permute.xlu0 %638
        %640 = vrot.lane.b32.xlu0 %v593, 2
        %v641 = vpop.permute.xlu0 %640
        %642 = vrot.lane.b32.xlu0 %v594, 2
        %v643 = vpop.permute.xlu0 %642
        %v647 = vadd.f32 %v588, %v639
        %v648 = vadd.f32 %v589, %v641
        %v649 = vadd.f32 %v590, %v643
        %s650 = scalar_lea.vmem %s186, 256
        %v651 = vld [vmem:[%s650] sm:$0xff]
        %v652 = vld [vmem:[%s650 + $0x8] sm:$0xff]
        %v653 = vld [vmem:[%s650 + $0x10] sm:$0xff]
        %v654 = vld [vmem:[%s650 + $0x18] sm:$0xf]
        %657 = vrot.lane.b32.xlu0 %v652, 3
        %v658 = vpop.permute.xlu0 %657
        %659 = vrot.lane.b32.xlu0 %v653, 3
        %v660 = vpop.permute.xlu0 %659
        %v663 = vadd.f32 %v604, %v658
        %v664 = vadd.f32 %v605, %v660
        %v666 = vrot.slane %v651, 5
        %v667 = vrot.slane %v652, 5
        %v668 = vsel %vm433, %v666, %v667
        %v669 = vrot.slane %v653, 5
        %v670 = vsel %vm433, %v667, %v669
        %v674 = vadd.f32 %v615, %v668
        %v675 = vadd.f32 %v616, %v670
        %v676 = vadd.f32 %v617, %v669
        %677 = vrot.lane.b32.xlu0 %v651, 126
        %v678 = vpop.permute.xlu0 %677
        %679 = vrot.lane.b32.xlu0 %v652, 126
        %v680 = vpop.permute.xlu0 %679
        %681 = vrot.lane.b32.xlu0 %v653, 126
        %v682 = vpop.permute.xlu0 %681
        %v686 = vadd.f32 %v567, %v678
        %v687 = vadd.f32 %v568, %v680
        %v688 = vadd.f32 %v569, %v682
        %689 = vrot.lane.b32.xlu0 %v652, 125
        %v690 = vpop.permute.xlu0 %689
        %691 = vrot.lane.b32.xlu0 %v653, 125
        %v692 = vpop.permute.xlu0 %691
        %v695 = vadd.f32 %v624, %v690
        %v696 = vadd.f32 %v625, %v692
        %v698 = vrot.slane %v652, 6
        %v699 = vrot.slane %v653, 6
        %v700 = vsel %vm209, %v698, %v699
        %v701 = vrot.slane %v654, 6
        %v702 = vsel %vm209, %v699, %v701
        %v706 = vadd.f32 %v635, %v698
        %v707 = vadd.f32 %v636, %v700
        %v708 = vadd.f32 %v637, %v702
        %s709 = scalar_lea.vmem %s186, 288
        %v710 = vld [vmem:[%s709] sm:$0xff]
        %v711 = vld [vmem:[%s709 + $0x8] sm:$0xff]
        %v712 = vld [vmem:[%s709 + $0x10] sm:$0xff]
        %v713 = vld [vmem:[%s709 + $0x18] sm:$0xf]
        %716 = vrot.lane.b32.xlu0 %v711, 119
        %v717 = vpop.permute.xlu0 %716
        %718 = vrot.lane.b32.xlu0 %v712, 119
        %v719 = vpop.permute.xlu0 %718
        %v722 = vadd.f32 %v663, %v717
        %v723 = vadd.f32 %v664, %v719
        %v725 = vrot.slane %v711, 3
        %v726 = vrot.slane %v712, 3
        %v727 = vsel %vm228, %v725, %v726
        %v728 = vrot.slane %v713, 3
        %v729 = vsel %vm228, %v726, %v728
        %v733 = vadd.f32 %v674, %v727
        %v734 = vadd.f32 %v675, %v729
        %v735 = vadd.f32 %v676, %v728
        %v736 = vrot.slane %v711, 2
        %v737 = vrot.slane %v712, 2
        %v738 = vsel %vm240, %v736, %v737
        %v739 = vrot.slane %v713, 2
        %v740 = vsel %vm240, %v737, %v739
        %741 = vrot.lane.b32.xlu0 %v736, 126
        %v742 = vpop.permute.xlu0 %741
        %743 = vrot.lane.b32.xlu0 %v738, 126
        %v744 = vpop.permute.xlu0 %743
        %745 = vrot.lane.b32.xlu0 %v740, 126
        %v746 = vpop.permute.xlu0 %745
        %v750 = vadd.f32 %v686, %v742
        %v751 = vadd.f32 %v687, %v744
        %v752 = vadd.f32 %v688, %v746
        %v753 = vadd.f32 %v695, %v717
        %v754 = vadd.f32 %v696, %v719
        %v756 = vrot.slane %v710, 3
        %v757 = vsel %vm228, %v756, %v725
        %v760 = vadd.f32 %v706, %v757
        %v761 = vadd.f32 %v707, %v727
        %v762 = vadd.f32 %v708, %v726
        %v766 = vadd.f32 %v647, %v736
        %v767 = vadd.f32 %v648, %v738
        %v768 = vadd.f32 %v649, %v740
        %v769 = vmax.f32 %v722, %v753
        %v770 = vmax.f32 %v723, %v754
        %v774 = vrot.slane %v760, 2
        %v775 = vrot.slane %v761, 2
        %v776 = vsel %vm240, %v774, %v775
        %v777 = vrot.slane %v762, 2
        %v778 = vsel %vm240, %v775, %v777
        %v782 = vmax.f32 %v733, %v776
        %v783 = vmax.f32 %v734, %v778
        %v784 = vmax.f32 %v735, %v777
        %788 = vrot.lane.b32.xlu0 %v766, 126
        %v789 = vpop.permute.xlu0 %788
        %790 = vrot.lane.b32.xlu0 %v767, 126
        %v791 = vpop.permute.xlu0 %790
        %792 = vrot.lane.b32.xlu0 %v768, 126
        %v793 = vpop.permute.xlu0 %792
        %v797 = vmax.f32 %v750, %v789
        %v798 = vmax.f32 %v751, %v791
        %v799 = vmax.f32 %v752, %v793
        %802 = vrot.lane.b32.xlu0 %v769, 125
        %v803 = vpop.permute.xlu0 %802
        %804 = vrot.lane.b32.xlu0 %v770, 125
        %v805 = vpop.permute.xlu0 %804
        %s808 = scalar_lea.vmem %s167, 16 [#allocation2]
        %809 = vst.msk [vmem:[%s808] sm:$0xff] %vm493, %v803
        %810 = vst.msk [vmem:[%s808 + $0x8] sm:$0xff] %vm493, %v805
        %814 = vrot.lane.b32.xlu0 %v782, 120
        %v815 = vpop.permute.xlu0 %814
        %816 = vrot.lane.b32.xlu0 %v783, 120
        %v817 = vpop.permute.xlu0 %816
        %818 = vrot.lane.b32.xlu0 %v784, 120
        %v819 = vpop.permute.xlu0 %818
        %s823 = scalar_lea.vmem %s174, 16 [#allocation4]
        %vm824 = vcmask 130049
        %825 = vst.msk [vmem:[%s823 - $0x1] sm:$0xfe] %vm824, %v815
        %826 = vst.msk [vmem:[%s823 + $0x7] sm:$0xff] %vm493, %v817
        %vm827 = vcmask 122880
        %828 = vst.msk [vmem:[%s823 + $0xf] sm:$0x1] %vm827, %v819
        %832 = vrot.lane.b32.xlu0 %v797, 121
        %v833 = vpop.permute.xlu0 %832
        %834 = vrot.lane.b32.xlu0 %v798, 121
        %v835 = vpop.permute.xlu0 %834
        %836 = vrot.lane.b32.xlu0 %v799, 121
        %v837 = vpop.permute.xlu0 %836
        %s841 = scalar_lea.vmem %s181, 16 [#allocation6]
        %842 = vst.msk [vmem:[%s841 - $0x7] sm:$0x80] %vm518, %v833
        %843 = vst.msk [vmem:[%s841 + $0x1] sm:$0xff] %vm493, %v835
        %844 = vst.msk [vmem:[%s841 + $0x9] sm:$0x7f] %vm521, %v837
        %s845 = scalar_lea.vmem %s186, 320
        %v846 = vld [vmem:[%s845] sm:$0xff]
        %v847 = vld [vmem:[%s845 + $0x8] sm:$0xff]
        %v848 = vld [vmem:[%s845 + $0x10] sm:$0xff]
        %v849 = vadd.f32 %v847, 0.0
        %v850 = vadd.f32 %v848, 0.0
        %v851 = vadd.f32 %v846, 0.0
        %s852 = scalar_lea.vmem %s186, 352
        %v853 = vld [vmem:[%s852] sm:$0xff]
        %v854 = vld [vmem:[%s852 + $0x8] sm:$0xff]
        %v855 = vld [vmem:[%s852 + $0x10] sm:$0xff]
        %v856 = vld [vmem:[%s852 + $0x18] sm:$0xf]
        %859 = vrot.lane.b32.xlu0 %v854, 12
        %v860 = vpop.permute.xlu0 %859
        %861 = vrot.lane.b32.xlu0 %v855, 12
        %v862 = vpop.permute.xlu0 %861
        %v865 = vadd.f32 %v849, %v860
        %v866 = vadd.f32 %v850, %v862
        %v868 = vrot.slane %v853, 5
        %v869 = vrot.slane %v854, 5
        %v870 = vsel %vm433, %v868, %v869
        %v874 = vadd.f32 %v851, %v868
        %v875 = vadd.f32 %v849, %v870
        %v876 = vadd.f32 %v850, %v869
        %v877 = vadd.f32 %v853, 0.0
        %v878 = vadd.f32 %v854, 0.0
        %v879 = vadd.f32 %v855, 0.0
        %880 = vrot.lane.b32.xlu0 %v854, 3
        %v881 = vpop.permute.xlu0 %880
        %882 = vrot.lane.b32.xlu0 %v855, 3
        %v883 = vpop.permute.xlu0 %882
        %v886 = vadd.f32 %v849, %v881
        %v887 = vadd.f32 %v850, %v883
        %v889 = vrot.slane %v854, 2
        %v890 = vrot.slane %v855, 2
        %v891 = vsel %vm240, %v889, %v890
        %v892 = vrot.slane %v856, 2
        %v893 = vsel %vm240, %v890, %v892
        %894 = vrot.lane.b32.xlu0 %v889, 126
        %v895 = vpop.permute.xlu0 %894
        %896 = vrot.lane.b32.xlu0 %v891, 126
        %v897 = vpop.permute.xlu0 %896
        %898 = vrot.lane.b32.xlu0 %v893, 126
        %v899 = vpop.permute.xlu0 %898
        %v903 = vadd.f32 %v851, %v895
        %v904 = vadd.f32 %v849, %v897
        %v905 = vadd.f32 %v850, %v899
        %s906 = scalar_lea.vmem %s186, 384
        %v907 = vld [vmem:[%s906] sm:$0xff]
        %v908 = vld [vmem:[%s906 + $0x8] sm:$0xff]
        %v909 = vld [vmem:[%s906 + $0x10] sm:$0xff]
        %v910 = vld [vmem:[%s906 + $0x18] sm:$0xf]
        %913 = vrot.lane.b32.xlu0 %v908, 3
        %v914 = vpop.permute.xlu0 %913
        %915 = vrot.lane.b32.xlu0 %v909, 3
        %v916 = vpop.permute.xlu0 %915
        %v919 = vadd.f32 %v865, %v914
        %v920 = vadd.f32 %v866, %v916
        %v922 = vrot.slane %v908, 1
        %v923 = vrot.slane %v909, 1
        %v924 = vsel %vm274, %v922, %v923
        %v925 = vrot.slane %v910, 1
        %v926 = vsel %vm274, %v923, %v925
        %v930 = vadd.f32 %v874, %v924
        %v931 = vadd.f32 %v875, %v926
        %v932 = vadd.f32 %v876, %v925
        %v933 = vrot.slane %v908, 2
        %v934 = vrot.slane %v909, 2
        %v935 = vsel %vm240, %v933, %v934
        %v936 = vrot.slane %v910, 2
        %v937 = vsel %vm240, %v934, %v936
        %v941 = vadd.f32 %v877, %v933
        %v942 = vadd.f32 %v878, %v935
        %v943 = vadd.f32 %v879, %v937
        %944 = vrot.lane.b32.xlu0 %v908, 122
        %v945 = vpop.permute.xlu0 %944
        %946 = vrot.lane.b32.xlu0 %v909, 122
        %v947 = vpop.permute.xlu0 %946
        %v950 = vadd.f32 %v886, %v945
        %v951 = vadd.f32 %v887, %v947
        %v953 = vrot.slane %v907, 3
        %v954 = vrot.slane %v908, 3
        %v955 = vsel %vm228, %v953, %v954
        %v956 = vrot.slane %v909, 3
        %v957 = vsel %vm228, %v954, %v956
        %v961 = vadd.f32 %v874, %v955
        %v962 = vadd.f32 %v875, %v957
        %v963 = vadd.f32 %v876, %v956
        %v964 = vadd.f32 %v903, %v933
        %v965 = vadd.f32 %v904, %v935
        %v966 = vadd.f32 %v905, %v937
        %s967 = scalar_lea.vmem %s186, 416
        %v968 = vld [vmem:[%s967] sm:$0xff]
        %v969 = vld [vmem:[%s967 + $0x8] sm:$0xff]
        %v970 = vld [vmem:[%s967 + $0x10] sm:$0xff]
        %v971 = vld [vmem:[%s967 + $0x18] sm:$0xf]
        %974 = vrot.lane.b32.xlu0 %v969, 6
        %v975 = vpop.permute.xlu0 %974
        %976 = vrot.lane.b32.xlu0 %v970, 6
        %v977 = vpop.permute.xlu0 %976
        %v980 = vadd.f32 %v919, %v975
        %v981 = vadd.f32 %v920, %v977
        %v983 = vrot.slane %v968, 3
        %v984 = vrot.slane %v969, 3
        %v985 = vsel %vm228, %v983, %v984
        %v986 = vrot.slane %v970, 3
        %v987 = vsel %vm228, %v984, %v986
        %v991 = vadd.f32 %v930, %v985
        %v992 = vadd.f32 %v931, %v987
        %v993 = vadd.f32 %v932, %v986
        %v995 = vrot.slane %v969, 2
        %v996 = vrot.slane %v970, 2
        %v997 = vsel %vm240, %v995, %v996
        %v998 = vrot.slane %v971, 2
        %v999 = vsel %vm240, %v996, %v998
        %1000 = vrot.lane.b32.xlu0 %v995, 126
        %v1001 = vpop.permute.xlu0 %1000
        %1002 = vrot.lane.b32.xlu0 %v997, 126
        %v1003 = vpop.permute.xlu0 %1002
        %1004 = vrot.lane.b32.xlu0 %v999, 126
        %v1005 = vpop.permute.xlu0 %1004
        %v1009 = vadd.f32 %v941, %v1001
        %v1010 = vadd.f32 %v942, %v1003
        %v1011 = vadd.f32 %v943, %v1005
        %v1012 = vadd.f32 %v950, %v975
        %v1013 = vadd.f32 %v951, %v977
        %v1014 = vrot.slane %v969, 6
        %v1015 = vrot.slane %v970, 6
        %v1016 = vsel %vm209, %v1014, %v1015
        %v1017 = vrot.slane %v971, 6
        %v1018 = vsel %vm209, %v1015, %v1017
        %v1022 = vadd.f32 %v961, %v1014
        %v1023 = vadd.f32 %v962, %v1016
        %v1024 = vadd.f32 %v963, %v1018
        %s1025 = scalar_lea.vmem %s186, 448
        %v1026 = vld [vmem:[%s1025] sm:$0xff]
        %v1027 = vld [vmem:[%s1025 + $0x8] sm:$0xff]
        %v1028 = vld [vmem:[%s1025 + $0x10] sm:$0xff]
        %v1029 = vld [vmem:[%s1025 + $0x18] sm:$0xf]
        %1032 = vrot.lane.b32.xlu0 %v1027, 9
        %v1033 = vpop.permute.xlu0 %1032
        %1034 = vrot.lane.b32.xlu0 %v1028, 9
        %v1035 = vpop.permute.xlu0 %1034
        %v1038 = vadd.f32 %v980, %v1033
        %v1039 = vadd.f32 %v981, %v1035
        %v1041 = vrot.slane %v1027, 6
        %v1042 = vrot.slane %v1028, 6
        %v1043 = vsel %vm209, %v1041, %v1042
        %v1044 = vrot.slane %v1029, 6
        %v1045 = vsel %vm209, %v1042, %v1044
        %v1049 = vadd.f32 %v991, %v1041
        %v1050 = vadd.f32 %v992, %v1043
        %v1051 = vadd.f32 %v993, %v1045
        %1053 = vrot.lane.b32.xlu0 %v1026, 126
        %v1054 = vpop.permute.xlu0 %1053
        %1055 = vrot.lane.b32.xlu0 %v1027, 126
        %v1056 = vpop.permute.xlu0 %1055
        %1057 = vrot.lane.b32.xlu0 %v1028, 126
        %v1058 = vpop.permute.xlu0 %1057
        %v1062 = vadd.f32 %v1009, %v1054
        %v1063 = vadd.f32 %v1010, %v1056
        %v1064 = vadd.f32 %v1011, %v1058
        %1065 = vrot.lane.b32.xlu0 %v1027, 125
        %v1066 = vpop.permute.xlu0 %1065
        %1067 = vrot.lane.b32.xlu0 %v1028, 125
        %v1068 = vpop.permute.xlu0 %1067
        %v1071 = vadd.f32 %v1012, %v1066
        %v1072 = vadd.f32 %v1013, %v1068
        %v1073 = vrot.slane %v1027, 1
        %v1074 = vrot.slane %v1028, 1
        %v1075 = vsel %vm274, %v1073, %v1074
        %v1076 = vrot.slane %v1029, 1
        %v1077 = vsel %vm274, %v1074, %v1076
        %v1081 = vadd.f32 %v1022, %v1075
        %v1082 = vadd.f32 %v1023, %v1077
        %v1083 = vadd.f32 %v1024, %v1076
        %v1084 = vadd.f32 %v964, %v1054
        %v1085 = vadd.f32 %v965, %v1056
        %v1086 = vadd.f32 %v966, %v1058
        %1089 = vrot.lane.b32.xlu0 %v1071, 6
        %v1090 = vpop.permute.xlu0 %1089
        %1091 = vrot.lane.b32.xlu0 %v1072, 6
        %v1092 = vpop.permute.xlu0 %1091
        %v1095 = vmax.f32 %v1038, %v1090
        %v1096 = vmax.f32 %v1039, %v1092
        %v1097 = vmax.f32 %v1049, %v1081
        %v1098 = vmax.f32 %v1050, %v1082
        %v1099 = vmax.f32 %v1051, %v1083
        %v1100 = vmax.f32 %v1062, %v1084
        %v1101 = vmax.f32 %v1063, %v1085
        %v1102 = vmax.f32 %v1064, %v1086
        %1105 = vrot.lane.b32.xlu0 %v1095, 116
        %v1106 = vpop.permute.xlu0 %1105
        %1107 = vrot.lane.b32.xlu0 %v1096, 116
        %v1108 = vpop.permute.xlu0 %1107
        %s1111 = scalar_lea.vmem %s167, 32 [#allocation2]
        %1112 = vst.msk [vmem:[%s1111] sm:$0xff] %vm493, %v1106
        %1113 = vst.msk [vmem:[%s1111 + $0x8] sm:$0xff] %vm493, %v1108
        %1117 = vrot.lane.b32.xlu0 %v1097, 120
        %v1118 = vpop.permute.xlu0 %1117
        %1119 = vrot.lane.b32.xlu0 %v1098, 120
        %v1120 = vpop.permute.xlu0 %1119
        %1121 = vrot.lane.b32.xlu0 %v1099, 120
        %v1122 = vpop.permute.xlu0 %1121
        %s1126 = scalar_lea.vmem %s174, 32 [#allocation4]
        %vm1127 = vcmask 130051
        %1128 = vst.msk [vmem:[%s1126 - $0x3] sm:$0xf8] %vm1127, %v1118
        %1129 = vst.msk [vmem:[%s1126 + $0x5] sm:$0xff] %vm493, %v1120
        %vm1130 = vcmask 124928
        %1131 = vst.msk [vmem:[%s1126 + $0xd] sm:$0x7] %vm1130, %v1122
        %1135 = vrot.lane.b32.xlu0 %v1100, 121
        %v1136 = vpop.permute.xlu0 %1135
        %1137 = vrot.lane.b32.xlu0 %v1101, 121
        %v1138 = vpop.permute.xlu0 %1137
        %1139 = vrot.lane.b32.xlu0 %v1102, 121
        %v1140 = vpop.permute.xlu0 %1139
        %s1144 = scalar_lea.vmem %s181, 32 [#allocation6]
        %1145 = vst.msk [vmem:[%s1144 - $0x7] sm:$0x80] %vm518, %v1136
        %1146 = vst.msk [vmem:[%s1144 + $0x1] sm:$0xff] %vm493, %v1138
        %1147 = vst.msk [vmem:[%s1144 + $0x9] sm:$0x7f] %vm521, %v1140
        %s1148 = scalar_lea.vmem %s186, 480
        %v1149 = vld [vmem:[%s1148] sm:$0xff]
        %v1150 = vld [vmem:[%s1148 + $0x8] sm:$0xff]
        %v1151 = vld [vmem:[%s1148 + $0x10] sm:$0xff]
        %v1152 = vld [vmem:[%s1148 + $0x18] sm:$0xf]
        %v1153 = vadd.f32 %v1150, 0.0
        %v1154 = vadd.f32 %v1151, 0.0
        %v1155 = vadd.f32 %v1149, 0.0
        %v1156 = vadd.f32 %v1152, 0.0
        %s1157 = scalar_lea.vmem %s186, 512
        %v1158 = vld [vmem:[%s1157] sm:$0xff]
        %v1159 = vld [vmem:[%s1157 + $0x8] sm:$0xff]
        %v1160 = vld [vmem:[%s1157 + $0x10] sm:$0xff]
        %v1161 = vld [vmem:[%s1157 + $0x18] sm:$0xf]
        %1164 = vrot.lane.b32.xlu0 %v1159, 3
        %v1165 = vpop.permute.xlu0 %1164
        %1166 = vrot.lane.b32.xlu0 %v1160, 3
        %v1167 = vpop.permute.xlu0 %1166
        %v1170 = vadd.f32 %v1153, %v1165
        %v1171 = vadd.f32 %v1154, %v1167
        %v1173 = vrot.slane %v1158, 5
        %v1174 = vrot.slane %v1159, 5
        %v1175 = vsel %vm433, %v1173, %v1174
        %v1176 = vrot.slane %v1160, 5
        %v1177 = vsel %vm433, %v1174, %v1176
        %v1181 = vadd.f32 %v1155, %v1173
        %v1182 = vadd.f32 %v1153, %v1175
        %v1183 = vadd.f32 %v1154, %v1177
        %v1185 = vrot.slane %v1159, 2
        %v1186 = vrot.slane %v1160, 2
        %v1187 = vsel %vm240, %v1185, %v1186
        %v1188 = vrot.slane %v1161, 2
        %v1189 = vsel %vm240, %v1186, %v1188
        %1190 = vrot.lane.b32.xlu0 %v1185, 2
        %v1191 = vpop.permute.xlu0 %1190
        %1192 = vrot.lane.b32.xlu0 %v1187, 2
        %v1193 = vpop.permute.xlu0 %1192
        %1194 = vrot.lane.b32.xlu0 %v1189, 2
        %v1195 = vpop.permute.xlu0 %1194
        %v1199 = vadd.f32 %v1155, %v1191
        %v1200 = vadd.f32 %v1153, %v1193
        %v1201 = vadd.f32 %v1154, %v1195
        %1202 = vrot.lane.b32.xlu0 %v1159, 9
        %v1203 = vpop.permute.xlu0 %1202
        %1204 = vrot.lane.b32.xlu0 %v1160, 9
        %v1205 = vpop.permute.xlu0 %1204
        %v1208 = vadd.f32 %v1153, %v1203
        %v1209 = vadd.f32 %v1154, %v1205
        %v1210 = vrot.slane %v1159, 3
        %v1211 = vrot.slane %v1160, 3
        %v1212 = vsel %vm228, %v1210, %v1211
        %v1213 = vrot.slane %v1161, 3
        %v1214 = vsel %vm228, %v1211, %v1213
        %v1218 = vadd.f32 %v1153, %v1212
        %v1219 = vadd.f32 %v1154, %v1214
        %v1220 = vadd.f32 %v1156, %v1213
        %1221 = vrot.lane.b32.xlu0 %v1159, 126
        %v1222 = vpop.permute.xlu0 %1221
        %1223 = vrot.lane.b32.xlu0 %v1160, 126
        %v1224 = vpop.permute.xlu0 %1223
        %1225 = vrot.lane.b32.xlu0 %v1161, 126
        %v1226 = vpop.permute.xlu0 %1225
        %v1230 = vadd.f32 %v1153, %v1222
        %v1231 = vadd.f32 %v1154, %v1224
        %v1232 = vadd.f32 %v1156, %v1226
        %s1233 = scalar_lea.vmem %s186, 544
        %v1234 = vld [vmem:[%s1233] sm:$0xff]
        %v1235 = vld [vmem:[%s1233 + $0x8] sm:$0xff]
        %v1236 = vld [vmem:[%s1233 + $0x10] sm:$0xff]
        %v1237 = vld [vmem:[%s1233 + $0x18] sm:$0xf]
        %1240 = vrot.lane.b32.xlu0 %v1235, 125
        %v1241 = vpop.permute.xlu0 %1240
        %1242 = vrot.lane.b32.xlu0 %v1236, 125
        %v1243 = vpop.permute.xlu0 %1242
        %v1246 = vadd.f32 %v1170, %v1241
        %v1247 = vadd.f32 %v1171, %v1243
        %v1249 = vrot.slane %v1235, 3
        %v1250 = vrot.slane %v1236, 3
        %v1251 = vsel %vm228, %v1249, %v1250
        %v1252 = vrot.slane %v1237, 3
        %v1253 = vsel %vm228, %v1250, %v1252
        %v1257 = vadd.f32 %v1181, %v1249
        %v1258 = vadd.f32 %v1182, %v1251
        %v1259 = vadd.f32 %v1183, %v1253
        %v1260 = vrot.slane %v1235, 2
        %v1261 = vrot.slane %v1236, 2
        %v1262 = vsel %vm240, %v1260, %v1261
        %v1263 = vrot.slane %v1237, 2
        %v1264 = vsel %vm240, %v1261, %v1263
        %v1268 = vadd.f32 %v1199, %v1260
        %v1269 = vadd.f32 %v1200, %v1262
        %v1270 = vadd.f32 %v1201, %v1264
        %1271 = vrot.lane.b32.xlu0 %v1235, 6
        %v1272 = vpop.permute.xlu0 %1271
        %1273 = vrot.lane.b32.xlu0 %v1236, 6
        %v1274 = vpop.permute.xlu0 %1273
        %v1277 = vadd.f32 %v1208, %v1272
        %v1278 = vadd.f32 %v1209, %v1274
        %v1280 = vrot.slane %v1234, 7
        %v1281 = vrot.slane %v1235, 7
        %v1282 = vsel %vm548, %v1280, %v1281
        %v1286 = vadd.f32 %v1218, %v1280
        %v1287 = vadd.f32 %v1219, %v1282
        %v1288 = vadd.f32 %v1220, %v1281
        %s1289 = scalar_lea.vmem %s186, 576
        %v1290 = vld [vmem:[%s1289] sm:$0xff]
        %v1291 = vld [vmem:[%s1289 + $0x8] sm:$0xff]
        %v1292 = vld [vmem:[%s1289 + $0x10] sm:$0xff]
        %v1293 = vld [vmem:[%s1289 + $0x18] sm:$0xf]
        %1296 = vrot.lane.b32.xlu0 %v1291, 122
        %v1297 = vpop.permute.xlu0 %1296
        %1298 = vrot.lane.b32.xlu0 %v1292, 122
        %v1299 = vpop.permute.xlu0 %1298
        %v1302 = vadd.f32 %v1246, %v1297
        %v1303 = vadd.f32 %v1247, %v1299
        %v1305 = vrot.slane %v1291, 6
        %v1306 = vrot.slane %v1292, 6
        %v1307 = vsel %vm209, %v1305, %v1306
        %v1308 = vrot.slane %v1293, 6
        %v1309 = vsel %vm209, %v1306, %v1308
        %v1313 = vadd.f32 %v1257, %v1305
        %v1314 = vadd.f32 %v1258, %v1307
        %v1315 = vadd.f32 %v1259, %v1309
        %1316 = vrot.lane.b32.xlu0 %v1291, 3
        %v1317 = vpop.permute.xlu0 %1316
        %1318 = vrot.lane.b32.xlu0 %v1292, 3
        %v1319 = vpop.permute.xlu0 %1318
        %v1322 = vadd.f32 %v1277, %v1317
        %v1323 = vadd.f32 %v1278, %v1319
        %v1325 = vrot.slane %v1290, 5
        %v1326 = vrot.slane %v1291, 5
        %v1327 = vsel %vm433, %v1325, %v1326
        %v1328 = vrot.slane %v1292, 5
        %v1329 = vsel %vm433, %v1326, %v1328
        %v1333 = vadd.f32 %v1286, %v1327
        %v1334 = vadd.f32 %v1287, %v1329
        %v1335 = vadd.f32 %v1288, %v1328
        %v1336 = vrot.slane %v1290, 6
        %v1337 = vsel %vm209, %v1336, %v1305
        %1338 = vrot.lane.b32.xlu0 %v1337, 126
        %v1339 = vpop.permute.xlu0 %1338
        %1340 = vrot.lane.b32.xlu0 %v1307, 126
        %v1341 = vpop.permute.xlu0 %1340
        %1342 = vrot.lane.b32.xlu0 %v1306, 126
        %v1343 = vpop.permute.xlu0 %1342
        %v1347 = vadd.f32 %v1230, %v1339
        %v1348 = vadd.f32 %v1231, %v1341
        %v1349 = vadd.f32 %v1232, %v1343
        %s1350 = scalar_lea.vmem %s186, 608
        %v1351 = vld [vmem:[%s1350] sm:$0xff]
        %v1352 = vld [vmem:[%s1350 + $0x8] sm:$0xff]
        %v1353 = vld [vmem:[%s1350 + $0x10] sm:$0xff]
        %1356 = vrot.lane.b32.xlu0 %v1352, 6
        %v1357 = vpop.permute.xlu0 %1356
        %1358 = vrot.lane.b32.xlu0 %v1353, 6
        %v1359 = vpop.permute.xlu0 %1358
        %v1362 = vadd.f32 %v1302, %v1357
        %v1363 = vadd.f32 %v1303, %v1359
        %v1365 = vrot.slane %v1351, 2
        %v1366 = vrot.slane %v1352, 2
        %v1367 = vsel %vm240, %v1365, %v1366
        %v1371 = vadd.f32 %v1313, %v1365
        %v1372 = vadd.f32 %v1314, %v1367
        %v1373 = vadd.f32 %v1315, %v1366
        %1374 = vrot.lane.b32.xlu0 %v1351, 2
        %v1375 = vpop.permute.xlu0 %1374
        %1376 = vrot.lane.b32.xlu0 %v1352, 2
        %v1377 = vpop.permute.xlu0 %1376
        %1378 = vrot.lane.b32.xlu0 %v1353, 2
        %v1379 = vpop.permute.xlu0 %1378
        %v1383 = vadd.f32 %v1268, %v1375
        %v1384 = vadd.f32 %v1269, %v1377
        %v1385 = vadd.f32 %v1270, %v1379
        %1386 = vrot.lane.b32.xlu0 %v1352, 125
        %v1387 = vpop.permute.xlu0 %1386
        %1388 = vrot.lane.b32.xlu0 %v1353, 125
        %v1389 = vpop.permute.xlu0 %1388
        %v1392 = vadd.f32 %v1322, %v1387
        %v1393 = vadd.f32 %v1323, %v1389
        %v1394 = vrot.slane %v1353, 2
        %v1395 = vsel %vm240, %v1366, %v1394
        %v1398 = vadd.f32 %v1333, %v1367
        %v1399 = vadd.f32 %v1334, %v1395
        %v1400 = vadd.f32 %v1335, %v1394
        %v1401 = vrot.slane %v1351, 6
        %v1402 = vrot.slane %v1352, 6
        %v1403 = vsel %vm209, %v1401, %v1402
        %v1404 = vrot.slane %v1353, 6
        %v1405 = vsel %vm209, %v1402, %v1404
        %v1409 = vadd.f32 %v1347, %v1403
        %v1410 = vadd.f32 %v1348, %v1405
        %v1411 = vadd.f32 %v1349, %v1404
        %1414 = vrot.lane.b32.xlu0 %v1392, 125
        %v1415 = vpop.permute.xlu0 %1414
        %1416 = vrot.lane.b32.xlu0 %v1393, 125
        %v1417 = vpop.permute.xlu0 %1416
        %v1420 = vmax.f32 %v1362, %v1415
        %v1421 = vmax.f32 %v1363, %v1417
        %v1425 = vrot.slane %v1398, 3
        %v1426 = vrot.slane %v1399, 3
        %v1427 = vsel %vm228, %v1425, %v1426
        %v1428 = vrot.slane %v1400, 3
        %v1429 = vsel %vm228, %v1426, %v1428
        %v1433 = vmax.f32 %v1371, %v1425
        %v1434 = vmax.f32 %v1372, %v1427
        %v1435 = vmax.f32 %v1373, %v1429
        %v1439 = vrot.slane %v1409, 2
        %v1440 = vrot.slane %v1410, 2
        %v1441 = vsel %vm240, %v1439, %v1440
        %v1442 = vrot.slane %v1411, 2
        %v1443 = vsel %vm240, %v1440, %v1442
        %1444 = vrot.lane.b32.xlu0 %v1439, 2
        %v1445 = vpop.permute.xlu0 %1444
        %1446 = vrot.lane.b32.xlu0 %v1441, 2
        %v1447 = vpop.permute.xlu0 %1446
        %1448 = vrot.lane.b32.xlu0 %v1443, 2
        %v1449 = vpop.permute.xlu0 %1448
        %v1453 = vmax.f32 %v1383, %v1445
        %v1454 = vmax.f32 %v1384, %v1447
        %v1455 = vmax.f32 %v1385, %v1449
        %1458 = vrot.lane.b32.xlu0 %v1420, 122
        %v1459 = vpop.permute.xlu0 %1458
        %1460 = vrot.lane.b32.xlu0 %v1421, 122
        %v1461 = vpop.permute.xlu0 %1460
        %s1464 = scalar_lea.vmem %s167, 48 [#allocation2]
        %1465 = vst.msk [vmem:[%s1464] sm:$0xff] %vm493, %v1459
        %1466 = vst.msk [vmem:[%s1464 + $0x8] sm:$0xff] %vm493, %v1461
        %1470 = vrot.lane.b32.xlu0 %v1433, 120
        %v1471 = vpop.permute.xlu0 %1470
        %1472 = vrot.lane.b32.xlu0 %v1434, 120
        %v1473 = vpop.permute.xlu0 %1472
        %1474 = vrot.lane.b32.xlu0 %v1435, 120
        %v1475 = vpop.permute.xlu0 %1474
        %s1479 = scalar_lea.vmem %s174, 48 [#allocation4]
        %vm1480 = vcmask 130054
        %1481 = vst.msk [vmem:[%s1479 - $0x6] sm:$0xc0] %vm1480, %v1471
        %1482 = vst.msk [vmem:[%s1479 + $0x2] sm:$0xff] %vm493, %v1473
        %vm1483 = vcmask 128000
        %1484 = vst.msk [vmem:[%s1479 + $0xa] sm:$0x3f] %vm1483, %v1475
        %1488 = vrot.lane.b32.xlu0 %v1453, 119
        %v1489 = vpop.permute.xlu0 %1488
        %1490 = vrot.lane.b32.xlu0 %v1454, 119
        %v1491 = vpop.permute.xlu0 %1490
        %1492 = vrot.lane.b32.xlu0 %v1455, 119
        %v1493 = vpop.permute.xlu0 %1492
        %s1497 = scalar_lea.vmem %s181, 48 [#allocation6]
        %1498 = vst.msk [vmem:[%s1497 - $0x7] sm:$0x80] %vm518, %v1489
        %1499 = vst.msk [vmem:[%s1497 + $0x1] sm:$0xff] %vm493, %v1491
        %1500 = vst.msk [vmem:[%s1497 + $0x9] sm:$0x7f] %vm521, %v1493
        %s1501 = sand.u32 %s55, 1
        %s1502 = scalar_lea.sflag [#allocation3], %s1501
        %s1503 = sand.u32 %s55, 1
        %s1504 = smul.addr %s1503, 64
        %s1505 = scalar_lea.vmem [#allocation2], %s1504
        %s1506 = sand.u32 %s21, 1
        %s1507 = scalar_lea.sflag [#allocation5], %s1506
        %s1508 = sand.u32 %s81, 1
        %s1509 = smul.addr %s1508, 64
        %s1510 = scalar_lea.vmem [#allocation4], %s1509
        %s1511 = sand.u32 %s21, 1
        %s1512 = scalar_lea.sflag [#allocation5], %s1511
        %s1513 = sand.u32 %s107, 1
        %s1514 = smul.addr %s1513, 64
        %s1515 = scalar_lea.vmem [#allocation6], %s1514
        // Predicated region
        $region25: #{forward.1} parent=23 // pred_check
          %p1516 = pneg %p65
        $region26: #{forward.1} parent=23 // pred_check_branch
          %1518 = sbr.rel (%p1516) target = $region28
        $region27: #{forward.1} parent=23 // pred_region
          %1520 = vsyncadd %s1502, 0
          %s1521 = smul.addr %s21, 8
          %s1522 = smul.addr %s1521, 8
          %s1523 = scalar_lea.hbm %s1, %s1522
          %s1524 = sshll.u32 %s1505, 4
          %s1525 = int_to_ptr.vmem [resolvable:$true] %s1524
          %s1526 = sshll.u32 %s1523, 4
          %s1527 = int_to_ptr.hbm [resolvable:$true] %s1526
          %1532 = dma.vmem_to_hbm [thread:$0]  %s1525, 1024, %s1527, %s1502, 128, 128, 8
        $region28: #{forward.1} parent=23 // pred_fallthru
          _
        // Predicated region
        $region29: #{forward.1} parent=23 // pred_check
          %p1533 = pneg %p91
        $region30: #{forward.1} parent=23 // pred_check_branch
          %1535 = sbr.rel (%p1533) target = $region32
        $region31: #{forward.1} parent=23 // pred_region
          %1537 = vsyncadd %s1507, 0
          %s1538 = smul.addr %s21, 8
          %s1539 = smul.addr %s1538, 8
          %s1540 = scalar_lea.hbm %s2, %s1539
          %s1541 = sshll.u32 %s1510, 4
          %s1542 = int_to_ptr.vmem [resolvable:$true] %s1541
          %s1543 = sshll.u32 %s1540, 4
          %s1544 = int_to_ptr.hbm [resolvable:$true] %s1543
          %1549 = dma.vmem_to_hbm [thread:$0]  %s1542, 1024, %s1544, %s1507, 128, 128, 8
        $region32: #{forward.1} parent=23 // pred_fallthru
          _
        // Predicated region
        $region33: #{forward.1} parent=23 // pred_check
          %p1550 = pneg %p117
        $region34: #{forward.1} parent=23 // pred_check_branch
          %1552 = sbr.rel (%p1550) target = $region36
        $region35: #{forward.1} parent=23 // pred_region
          %1554 = vsyncadd %s1512, 0
          %s1555 = smul.addr %s21, 8
          %s1556 = smul.addr %s1555, 8
          %s1557 = scalar_lea.hbm %s3, %s1556
          %s1558 = sshll.u32 %s1515, 4
          %s1559 = int_to_ptr.vmem [resolvable:$true] %s1558
          %s1560 = sshll.u32 %s1557, 4
          %s1561 = int_to_ptr.hbm [resolvable:$true] %s1560
          %1566 = dma.vmem_to_hbm [thread:$0]  %s1559, 1024, %s1561, %s1512, 128, 128, 8
        $region36: #{forward.1} parent=23 // pred_fallthru
          _
      $region24: #{forward.1} parent=5 // pred_fallthru
        _
      %p1567 = scmp.le.s32.totalorder 2, %s16
      // Predicated region
      $region37: #{forward.1} parent=5 // pred_check
        %p1568 = pneg %p1567
      $region38: #{forward.1} parent=5 // pred_check_branch
        %1570 = sbr.rel (%p1568) target = $region40
      $region39: #{forward.1} parent=5 // pred_region
        %s1571 = ssub.s32 %s16, 2
        // Predicated region
        $region41: #{forward.1} parent=39 // pred_check
          %p1572 = pneg %p71
        $region42: #{forward.1} parent=39 // pred_check_branch
          %1574 = sbr.rel (%p1572) target = $region44
        $region43: #{forward.1} parent=39 // pred_region
          %s1575 = sand.u32 %s56, 1
          %s1576 = scalar_lea.sflag [#allocation3], %s1575
          %s1577 = sand.u32 %s56, 1
          %s1578 = smul.addr %s1577, 64
          %s1579 = scalar_lea.vmem [#allocation2], %s1578
          %1581 = dma.done %s1576, 1024
        $region44: #{forward.1} parent=39 // pred_fallthru
          _
        // Predicated region
        $region45: #{forward.1} parent=39 // pred_check
          %p1582 = pneg %p97
        $region46: #{forward.1} parent=39 // pred_check_branch
          %1584 = sbr.rel (%p1582) target = $region48
        $region47: #{forward.1} parent=39 // pred_region
          %s1585 = sand.u32 %s22, 1
          %s1586 = scalar_lea.sflag [#allocation5], %s1585
          %s1587 = sand.u32 %s82, 1
          %s1588 = smul.addr %s1587, 64
          %s1589 = scalar_lea.vmem [#allocation4], %s1588
          %1591 = dma.done %s1586, 1024
        $region48: #{forward.1} parent=39 // pred_fallthru
          _
        // Predicated region
        $region49: #{forward.1} parent=39 // pred_check
          %p1592 = pneg %p123
        $region50: #{forward.1} parent=39 // pred_check_branch
          %1594 = sbr.rel (%p1592) target = $region52
        $region51: #{forward.1} parent=39 // pred_region
          %s1595 = sand.u32 %s22, 1
          %s1596 = scalar_lea.sflag [#allocation5], %s1595
          %s1597 = sand.u32 %s108, 1
          %s1598 = smul.addr %s1597, 64
          %s1599 = scalar_lea.vmem [#allocation6], %s1598
          %1601 = dma.done %s1596, 1024
        $region52: #{forward.1} parent=39 // pred_fallthru
          _
      $region40: #{forward.1} parent=5 // pred_fallthru
        _
    $region6: #{forward.1} parent=1 // loop_footer
      %s20 = sadd.s32 1, %s16
    $region7: #{forward.1} parent=1 // loop_footer_branch
      %15 = sbr.rel target = $region3
    $region8: #{forward.1} parent=1 // loop_exit
      _
    %1602 = vsyncpa [#allocation3], 1
    %s1603 = scalar_lea.sflag [#allocation3], 1
    %1604 = vsyncpa %s1603, 1
    %1605 = vsyncpa [#allocation5], 1
    %s1606 = scalar_lea.sflag [#allocation5], 1
    %1607 = vsyncpa %s1606, 1

</llo_original>
